<compile_context>
chip_gen: v7x
topology: tpu7x:2x2x1
jax: 0.10.0
libtpu: 0.0.40
codegen_flags: <defaults>
</compile_context>

<pallas_src>
import functools

import jax
import jax.numpy as jnp
from jax.experimental import pallas as pl
from jax.experimental.pallas import tpu as pltpu

BN_EPS = 1e-5
LANE = 128


def _pair(v):
    if isinstance(v, (tuple, list)):
        return int(v[0]), int(v[1])
    return int(v), int(v)


def _round_up(x, m):
    return ((x + m - 1) // m) * m


# ----------------------------------------------------------------------------
# Kernel 1: conv via shifted dots (no im2col) + per-channel sum / sum-of-sq.
#   refs = kh input-row refs (Wp, Cin_p) bf16, weight ref (kh*kw, Cin_p, Cout_p)
#          bf16 (resident), then outputs: y (Wo, Cout_p) f32,
#          sum (1, Cout_p) f32, sumsq (1, Cout_p) f32 (resident accumulators).
# ----------------------------------------------------------------------------
def conv_stats_kernel(*refs, kh, kw, sw, wo):
    x_rows = refs[:kh]
    w_ref = refs[kh]
    y_ref, sum_ref, ssq_ref = refs[kh + 1:kh + 4]

    acc = None
    for ki in range(kh):
        x_row = x_rows[ki][...]                                  # (Wp, Cin_p)
        for kj in range(kw):
            xs = x_row[kj:kj + (wo - 1) * sw + 1:sw, :]          # (Wo, Cin_p)
            w_tap = w_ref[ki * kw + kj]                          # (Cin_p, Cout_p)
            part = jnp.dot(xs, w_tap, preferred_element_type=jnp.float32)
            acc = part if acc is None else acc + part

    y_ref[...] = acc                                             # pre-BN conv out

    row_sum = jnp.sum(acc, axis=0, keepdims=True)
    row_ssq = jnp.sum(acc * acc, axis=0, keepdims=True)
    first = (pl.program_id(0) == 0) & (pl.program_id(1) == 0)

    @pl.when(first)
    def _():
        sum_ref[...] = row_sum
        ssq_ref[...] = row_ssq

    @pl.when(jnp.logical_not(first))
    def _():
        sum_ref[...] += row_sum
        ssq_ref[...] += row_ssq


# ----------------------------------------------------------------------------
# Kernel 2: finalize BN (mean/var from sum & sumsq) + affine + ReLU per tile.
# ----------------------------------------------------------------------------
def bn_apply_kernel(y_ref, sum_ref, ssq_ref, gamma_ref, beta_ref, o_ref, *,
                    count, eps, relu):
    inv_n = 1.0 / count
    mean = sum_ref[...] * inv_n
    var = jnp.maximum(ssq_ref[...] * inv_n - mean * mean, 0.0)
    scale = gamma_ref[...] * jax.lax.rsqrt(var + eps)            # (1, C)
    shift = beta_ref[...] - mean * scale                         # (1, C)
    out = y_ref[...] * scale + shift
    if relu:
        out = jnp.maximum(out, 0.0)
    o_ref[...] = out.astype(o_ref.dtype)


# ----------------------------------------------------------------------------
# One ConvBNReLU stage: conv+stats kernel, then parallel BN-apply kernel.
#   x      : (N, H, W, Cin_p)  bf16, channels already padded to 128 multiple
#   w_mat  : (kh*kw, Cin_p, Cout_p) bf16
#   gamma/beta : (1, Cout_p) f32
# ----------------------------------------------------------------------------
def conv_bn_relu_stage(x, w_mat, gamma, beta, *, kh, kw, sh, sw, ph, pw,
                       relu, out_dtype):
    N, H, W, cin_p = x.shape
    cout_p = w_mat.shape[-1]
    Ho = (H + 2 * ph - kh) // sh + 1
    Wo = (W + 2 * pw - kw) // sw + 1
    xp = jnp.pad(x, ((0, 0), (ph, ph), (pw, pw), (0, 0))) if (ph or pw) else x
    Wp = W + 2 * pw

    # kh views of the same padded activation, each selecting one tap row.
    x_specs = [
        pl.BlockSpec((None, None, Wp, cin_p),
                     lambda n, ho, _ki=ki: (n, ho * sh + _ki, 0, 0))
        for ki in range(kh)
    ]
    w_spec = pl.BlockSpec((kh * kw, cin_p, cout_p), lambda n, ho: (0, 0, 0))

    conv_kernel = functools.partial(conv_stats_kernel, kh=kh, kw=kw, sw=sw, wo=Wo)
    conv_flops = 2 * N * Ho * Wo * kh * kw * cin_p * cout_p
    conv_bytes = (kh * xp.size * xp.dtype.itemsize
                  + w_mat.size * w_mat.dtype.itemsize
                  + N * Ho * Wo * cout_p * 4 + 2 * cout_p * 4)

    y, csum, cssq = pl.pallas_call(
        conv_kernel,
        out_shape=(
            jax.ShapeDtypeStruct((N, Ho, Wo, cout_p), jnp.float32),
            jax.ShapeDtypeStruct((1, cout_p), jnp.float32),
            jax.ShapeDtypeStruct((1, cout_p), jnp.float32),
        ),
        grid=(N, Ho),
        in_specs=x_specs + [w_spec],
        out_specs=(
            pl.BlockSpec((None, None, Wo, cout_p), lambda n, ho: (n, ho, 0, 0)),
            pl.BlockSpec((1, cout_p), lambda n, ho: (0, 0)),
            pl.BlockSpec((1, cout_p), lambda n, ho: (0, 0)),
        ),
        compiler_params=pltpu.CompilerParams(
            dimension_semantics=("arbitrary", "arbitrary"),
            vmem_limit_bytes=32 * 1024 * 1024),
        cost_estimate=pl.CostEstimate(flops=conv_flops, transcendentals=0,
                                      bytes_accessed=conv_bytes),
    )(*([xp] * kh), w_mat)

    # Phase 2: BN finalize + affine + ReLU, tiled over M rows, megacore-parallel.
    M = N * Ho * Wo
    tm = min(512, _round_up(M, 8))
    Mp = _round_up(M, tm)
    y_flat = y.reshape(M, cout_p)
    if Mp != M:
        y_flat = jnp.pad(y_flat, ((0, Mp - M), (0, 0)))

    apply_kernel = functools.partial(bn_apply_kernel, count=float(M),
                                     eps=BN_EPS, relu=relu)
    apply_bytes = Mp * cout_p * (4 + jnp.dtype(out_dtype).itemsize) + 4 * cout_p * 4
    out_flat = pl.pallas_call(
        apply_kernel,
        out_shape=jax.ShapeDtypeStruct((Mp, cout_p), out_dtype),
        grid=(Mp // tm,),
        in_specs=[
            pl.BlockSpec((tm, cout_p), lambda i: (i, 0)),
            pl.BlockSpec((1, cout_p), lambda i: (0, 0)),
            pl.BlockSpec((1, cout_p), lambda i: (0, 0)),
            pl.BlockSpec((1, cout_p), lambda i: (0, 0)),
            pl.BlockSpec((1, cout_p), lambda i: (0, 0)),
        ],
        out_specs=pl.BlockSpec((tm, cout_p), lambda i: (i, 0)),
        compiler_params=pltpu.CompilerParams(dimension_semantics=("parallel",)),
        cost_estimate=pl.CostEstimate(flops=6 * Mp * cout_p,
                                      transcendentals=cout_p,
                                      bytes_accessed=apply_bytes),
    )(y_flat, csum, cssq, gamma, beta)

    return out_flat[:M].reshape(N, Ho, Wo, cout_p)


# ----------------------------------------------------------------------------
# Parameter plumbing (PyTorch layouts -> kernel layouts, lane padding).
# ----------------------------------------------------------------------------
def _prep_conv_weight(w_oihw, cin_p, cout_p):
    # (Cout, Cin, KH, KW) -> (KH*KW, Cin_p, Cout_p) bf16, zero padded.
    c_out, c_in, kh, kw = w_oihw.shape
    w = jnp.transpose(w_oihw, (2, 3, 1, 0))
    w = jnp.pad(w, ((0, 0), (0, 0), (0, cin_p - c_in), (0, cout_p - c_out)))
    return w.reshape(kh * kw, cin_p, cout_p).astype(jnp.bfloat16)


def _prep_bn_param(v, c_p, fill):
    c = v.shape[0]
    return jnp.pad(v.astype(jnp.float32), (0, c_p - c),
                   constant_values=fill).reshape(1, c_p)


def dual_conv_bn_relu_forward(x_nchw, params, *, kernel_size=3, stride=1,
                              padding=1):
    kh, kw = _pair(kernel_size)
    sh, sw = _pair(stride)
    ph, pw = _pair(padding)

    c_out, c_in = params["w1"].shape[0], params["w1"].shape[1]
    cin_p = _round_up(max(c_in, LANE), LANE)
    cmid_p = _round_up(max(c_out, LANE), LANE)

    # NCHW (PyTorch) -> NHWC, pad channels to a lane-dense multiple of 128.
    x = jnp.transpose(x_nchw, (0, 2, 3, 1)).astype(jnp.float32)
    x = jnp.pad(x, ((0, 0), (0, 0), (0, 0), (0, cin_p - c_in)))
    x = x.astype(jnp.bfloat16)

    w1 = _prep_conv_weight(params["w1"], cin_p, cmid_p)
    w2 = _prep_conv_weight(params["w2"], cmid_p, cmid_p)
    g1 = _prep_bn_param(params["g1"], cmid_p, 1.0)
    b1 = _prep_bn_param(params["b1"], cmid_p, 0.0)
    g2 = _prep_bn_param(params["g2"], cmid_p, 1.0)
    b2 = _prep_bn_param(params["b2"], cmid_p, 0.0)

    # Stage 1: ConvBNReLU -> bf16 NHWC (stays lane-padded; feeds stage 2 directly).
    h = conv_bn_relu_stage(x, w1, g1, b1, kh=kh, kw=kw, sh=sh, sw=sw,
                           ph=ph, pw=pw, relu=True, out_dtype=jnp.bfloat16)
    # Stage 2: ConvBNReLU -> f32
    y = conv_bn_relu_stage(h, w2, g2, b2, kh=kh, kw=kw, sh=sh, sw=sw,
                           ph=ph, pw=pw, relu=True, out_dtype=jnp.float32)

    # TODO(synk): further fusion — keep both 3x3 convs per spatial tile in VMEM
    # with a 2-pixel halo so the stage-1 activation never round-trips HBM.
    y = y[..., :c_out]
    return jnp.transpose(y, (0, 3, 1, 2))


# ----------------------------------------------------------------------------
# Pure-JAX reference (f32) for validation, and parameter init.
# ----------------------------------------------------------------------------
def reference_forward(x_nchw, params, *, kernel_size=3, stride=1, padding=1):
    kh, kw = _pair(kernel_size)
    sh, sw = _pair(stride)
    ph, pw = _pair(padding)

    def cbr(x, w, g, b):
        y = jax.lax.conv_general_dilated(
            x, w, window_strides=(sh, sw), padding=[(ph, ph), (pw, pw)],
            dimension_numbers=("NCHW", "OIHW", "NCHW"),
            precision=jax.lax.Precision.HIGHEST)
        mean = jnp.mean(y, axis=(0, 2, 3), keepdims=True)
        var = jnp.mean((y - mean) ** 2, axis=(0, 2, 3), keepdims=True)
        y_hat = (y - mean) * jax.lax.rsqrt(var + BN_EPS)
        out = y_hat * g.reshape(1, -1, 1, 1) + b.reshape(1, -1, 1, 1)
        return jnp.maximum(out, 0.0)

    h = cbr(x_nchw, params["w1"], params["g1"], params["b1"])
    return cbr(h, params["w2"], params["g2"], params["b2"])


def init_params(key, in_channels, out_channels):
    k1, k2 = jax.random.split(key)
    fan1 = in_channels * 9
    fan2 = out_channels * 9
    return {
        "w1": jax.random.normal(k1, (out_channels, in_channels, 3, 3),
                                jnp.float32) / jnp.sqrt(fan1),
        "g1": 1.0 + 0.1 * jnp.arange(out_channels, dtype=jnp.float32),
        "b1": 0.05 * jnp.arange(out_channels, dtype=jnp.float32),
        "w2": jax.random.normal(k2, (out_channels, out_channels, 3, 3),
                                jnp.float32) / jnp.sqrt(fan2),
        "g2": 1.0 - 0.05 * jnp.arange(out_channels, dtype=jnp.float32),
        "b2": -0.02 * jnp.arange(out_channels, dtype=jnp.float32),
    }


if __name__ == "__main__":
    key = jax.random.PRNGKey(0)
    kx, kp = jax.random.split(key)

    N, Cin, H, W = 2, 4, 16, 16
    Cout = 8
    kernel_size, stride, padding = 3, 1, 1

    x = jax.random.normal(kx, (N, Cin, H, W), jnp.float32)
    params = init_params(kp, Cin, Cout)

    # Keep conv operands exactly bf16-representable so the f32 reference and
    # the bf16-MXU Pallas path agree tightly.
    x = x.astype(jnp.bfloat16).astype(jnp.float32)
    for k in ("w1", "w2"):
        params[k] = params[k].astype(jnp.bfloat16).astype(jnp.float32)

    fwd = jax.jit(functools.partial(dual_conv_bn_relu_forward,
                                    kernel_size=kernel_size, stride=stride,
                                    padding=padding))
    out = jax.block_until_ready(fwd(x, params))

    assert out.shape == (N, Cout, H, W), out.shape
    assert bool(jnp.all(jnp.isfinite(out)))

    ref = reference_forward(x, params, kernel_size=kernel_size,
                            stride=stride, padding=padding)
    max_err = float(jnp.max(jnp.abs(out - ref)))
    assert max_err < 0.15, f"max abs err vs reference: {max_err}"

    print("KERNEL_OK")
</pallas_src>

<mosaic_0001>
module attributes {stable_mosaic.version = 11 : i64} {
  func.func @bn_apply_kernel(%arg0: i32, %arg1: memref<512x128xf32, #tpu.memory_space<vmem>>, %arg2: memref<1x128xf32, #tpu.memory_space<vmem>>, %arg3: memref<1x128xf32, #tpu.memory_space<vmem>>, %arg4: memref<1x128xf32, #tpu.memory_space<vmem>>, %arg5: memref<1x128xf32, #tpu.memory_space<vmem>>, %arg6: memref<512x128xbf16, #tpu.memory_space<vmem>>) attributes {dimension_semantics = [#tpu.dimension_semantics<parallel>], iteration_bounds = array<i64: 1>, scalar_prefetch = 0 : i64, scratch_operands = 0 : i64, tpu.core_type = #tpu.core_type<tc>, window_params = [{transform_indices = @transform_0, window_bounds = array<i64: 512, 128>}, {pipeline_mode = #tpu.pipeline_mode<synchronous>, transform_indices = @transform_1, window_bounds = array<i64: 1, 128>}, {pipeline_mode = #tpu.pipeline_mode<synchronous>, transform_indices = @transform_2, window_bounds = array<i64: 1, 128>}, {pipeline_mode = #tpu.pipeline_mode<synchronous>, transform_indices = @transform_3, window_bounds = array<i64: 1, 128>}, {pipeline_mode = #tpu.pipeline_mode<synchronous>, transform_indices = @transform_4, window_bounds = array<i64: 1, 128>}, {transform_indices = @transform_5, window_bounds = array<i64: 512, 128>}]} {
    %c0 = arith.constant 0 : index
    %c0_0 = arith.constant 0 : index
    %0 = vector.load %arg2[%c0, %c0_0] : memref<1x128xf32, #tpu.memory_space<vmem>>, vector<1x128xf32>
    %cst = arith.constant 0.001953125 : f32
    %1 = vector.broadcast %cst : f32 to vector<1x128xf32>
    %2 = arith.mulf %0, %1 : vector<1x128xf32>
    %c0_1 = arith.constant 0 : index
    %c0_2 = arith.constant 0 : index
    %3 = vector.load %arg3[%c0_1, %c0_2] : memref<1x128xf32, #tpu.memory_space<vmem>>, vector<1x128xf32>
    %cst_3 = arith.constant 0.001953125 : f32
    %4 = vector.broadcast %cst_3 : f32 to vector<1x128xf32>
    %5 = arith.mulf %3, %4 : vector<1x128xf32>
    %6 = arith.mulf %2, %2 : vector<1x128xf32>
    %7 = arith.subf %5, %6 : vector<1x128xf32>
    %cst_4 = arith.constant 0.000000e+00 : f32
    %8 = vector.broadcast %cst_4 : f32 to vector<1x128xf32>
    %9 = arith.maximumf %7, %8 : vector<1x128xf32>
    %c0_5 = arith.constant 0 : index
    %c0_6 = arith.constant 0 : index
    %10 = vector.load %arg4[%c0_5, %c0_6] : memref<1x128xf32, #tpu.memory_space<vmem>>, vector<1x128xf32>
    %cst_7 = arith.constant 9.99999974E-6 : f32
    %11 = vector.broadcast %cst_7 : f32 to vector<1x128xf32>
    %12 = arith.addf %9, %11 : vector<1x128xf32>
    %13 = math.rsqrt %12 : vector<1x128xf32>
    %14 = arith.mulf %10, %13 : vector<1x128xf32>
    %c0_8 = arith.constant 0 : index
    %c0_9 = arith.constant 0 : index
    %15 = vector.load %arg5[%c0_8, %c0_9] : memref<1x128xf32, #tpu.memory_space<vmem>>, vector<1x128xf32>
    %16 = arith.mulf %2, %14 : vector<1x128xf32>
    %17 = arith.subf %15, %16 : vector<1x128xf32>
    %c0_10 = arith.constant 0 : index
    %c0_11 = arith.constant 0 : index
    %18 = vector.load %arg1[%c0_10, %c0_11] : memref<512x128xf32, #tpu.memory_space<vmem>>, vector<512x128xf32>
    %19 = vector.broadcast %14 : vector<1x128xf32> to vector<512x128xf32>
    %20 = arith.mulf %18, %19 : vector<512x128xf32>
    %21 = vector.broadcast %17 : vector<1x128xf32> to vector<512x128xf32>
    %22 = arith.addf %20, %21 : vector<512x128xf32>
    %cst_12 = arith.constant 0.000000e+00 : f32
    %23 = vector.broadcast %cst_12 : f32 to vector<512x128xf32>
    %24 = arith.maximumf %22, %23 : vector<512x128xf32>
    %25 = arith.truncf %24 : vector<512x128xf32> to vector<512x128xbf16>
    %c0_13 = arith.constant 0 : index
    %c0_14 = arith.constant 0 : index
    %26 = vector.load %arg6[%c0_13, %c0_14] : memref<512x128xbf16, #tpu.memory_space<vmem>>, vector<512x128xbf16>
    tpu.vector_store %arg6[%c0_13, %c0_14], %25 {strides = array<i32>} : memref<512x128xbf16, #tpu.memory_space<vmem>>, vector<512x128xbf16>,
    return
  }
  func.func @transform_0(%arg0: i32) -> (i32, i32) {
    %c0_i32 = arith.constant 0 : i32
    %c0_i32_0 = arith.constant 0 : i32
    return %arg0, %c0_i32 : i32, i32
  }
  func.func @transform_1(%arg0: i32) -> (i32, i32) {
    %c0_i32 = arith.constant 0 : i32
    %c0_i32_0 = arith.constant 0 : i32
    %c0_i32_1 = arith.constant 0 : i32
    return %c0_i32, %c0_i32_0 : i32, i32
  }
  func.func @transform_2(%arg0: i32) -> (i32, i32) {
    %c0_i32 = arith.constant 0 : i32
    %c0_i32_0 = arith.constant 0 : i32
    %c0_i32_1 = arith.constant 0 : i32
    return %c0_i32, %c0_i32_0 : i32, i32
  }
  func.func @transform_3(%arg0: i32) -> (i32, i32) {
    %c0_i32 = arith.constant 0 : i32
    %c0_i32_0 = arith.constant 0 : i32
    %c0_i32_1 = arith.constant 0 : i32
    return %c0_i32, %c0_i32_0 : i32, i32
  }
  func.func @transform_4(%arg0: i32) -> (i32, i32) {
    %c0_i32 = arith.constant 0 : i32
    %c0_i32_0 = arith.constant 0 : i32
    %c0_i32_1 = arith.constant 0 : i32
    return %c0_i32, %c0_i32_0 : i32, i32
  }
  func.func @transform_5(%arg0: i32) -> (i32, i32) {
    %c0_i32 = arith.constant 0 : i32
    %c0_i32_0 = arith.constant 0 : i32
    return %arg0, %c0_i32 : i32, i32
  }
}

module attributes {stable_mosaic.version = 11 : i64} {
  func.func @conv_stats_kernel(%arg0: i32, %arg1: i32, %arg2: memref<1x1x18x128xbf16, #tpu.memory_space<vmem>>, %arg3: memref<1x1x18x128xbf16, #tpu.memory_space<vmem>>, %arg4: memref<1x1x18x128xbf16, #tpu.memory_space<vmem>>, %arg5: memref<9x128x128xbf16, #tpu.memory_space<vmem>>, %arg6: memref<1x1x16x128xf32, #tpu.memory_space<vmem>>, %arg7: memref<1x128xf32, #tpu.memory_space<vmem>>, %arg8: memref<1x128xf32, #tpu.memory_space<vmem>>) attributes {dimension_semantics = [#tpu.dimension_semantics<arbitrary>, #tpu.dimension_semantics<arbitrary>], iteration_bounds = array<i64: 2, 16>, scalar_prefetch = 0 : i64, scratch_operands = 0 : i64, tpu.core_type = #tpu.core_type<tc>, window_params = [{transform_indices = @transform_0, window_bounds = array<i64: 1, 1, 18, 128>}, {transform_indices = @transform_1, window_bounds = array<i64: 1, 1, 18, 128>}, {transform_indices = @transform_2, window_bounds = array<i64: 1, 1, 18, 128>}, {pipeline_mode = #tpu.pipeline_mode<synchronous>, transform_indices = @transform_3, window_bounds = array<i64: 9, 128, 128>}, {transform_indices = @transform_4, window_bounds = array<i64: 1, 1, 16, 128>}, {pipeline_mode = #tpu.pipeline_mode<synchronous>, transform_indices = @transform_5, window_bounds = array<i64: 1, 128>}, {pipeline_mode = #tpu.pipeline_mode<synchronous>, transform_indices = @transform_6, window_bounds = array<i64: 1, 128>}]} {
    %c0 = arith.constant 0 : index
    %c0_0 = arith.constant 0 : index
    %c0_1 = arith.constant 0 : index
    %c0_2 = arith.constant 0 : index
    %0 = vector.load %arg2[%c0, %c0_0, %c0_1, %c0_2] : memref<1x1x18x128xbf16, #tpu.memory_space<vmem>>, vector<1x1x18x128xbf16>
    %1 = vector.shape_cast %0 : vector<1x1x18x128xbf16> to vector<18x128xbf16>
    %2 = vector.extract_strided_slice %1 {offsets = [0, 0], sizes = [16, 128], strides = [1, 1]} : vector<18x128xbf16> to vector<16x128xbf16>
    %c0_3 = arith.constant 0 : index
    %c0_4 = arith.constant 0 : index
    %c0_5 = arith.constant 0 : index
    %3 = vector.load %arg5[%c0_3, %c0_4, %c0_5] : memref<9x128x128xbf16, #tpu.memory_space<vmem>>, vector<1x128x128xbf16>
    %4 = vector.shape_cast %3 : vector<1x128x128xbf16> to vector<128x128xbf16>
    %cst = arith.constant dense<0.000000e+00> : vector<16x128xf32>
    %5 = tpu.matmul %2, %4, %cst {dimension_numbers = #tpu.dot_dimension_numbers<[1], [0], [0], [1], [0, 0, 1, 1], [], []>} : vector<16x128xbf16>, vector<128x128xbf16>, vector<16x128xf32> -> vector<16x128xf32>
    %6 = vector.extract_strided_slice %1 {offsets = [1, 0], sizes = [16, 128], strides = [1, 1]} : vector<18x128xbf16> to vector<16x128xbf16>
    %c1 = arith.constant 1 : index
    %c0_6 = arith.constant 0 : index
    %c0_7 = arith.constant 0 : index
    %7 = vector.load %arg5[%c1, %c0_6, %c0_7] : memref<9x128x128xbf16, #tpu.memory_space<vmem>>, vector<1x128x128xbf16>
    %8 = vector.shape_cast %7 : vector<1x128x128xbf16> to vector<128x128xbf16>
    %cst_8 = arith.constant dense<0.000000e+00> : vector<16x128xf32>
    %9 = tpu.matmul %6, %8, %cst_8 {dimension_numbers = #tpu.dot_dimension_numbers<[1], [0], [0], [1], [0, 0, 1, 1], [], []>} : vector<16x128xbf16>, vector<128x128xbf16>, vector<16x128xf32> -> vector<16x128xf32>
    %10 = arith.addf %5, %9 : vector<16x128xf32>
    %11 = vector.extract_strided_slice %1 {offsets = [2, 0], sizes = [16, 128], strides = [1, 1]} : vector<18x128xbf16> to vector<16x128xbf16>
    %c2 = arith.constant 2 : index
    %c0_9 = arith.constant 0 : index
    %c0_10 = arith.constant 0 : index
    %12 = vector.load %arg5[%c2, %c0_9, %c0_10] : memref<9x128x128xbf16, #tpu.memory_space<vmem>>, vector<1x128x128xbf16>
    %13 = vector.shape_cast %12 : vector<1x128x128xbf16> to vector<128x128xbf16>
    %cst_11 = arith.constant dense<0.000000e+00> : vector<16x128xf32>
    %14 = tpu.matmul %11, %13, %cst_11 {dimension_numbers = #tpu.dot_dimension_numbers<[1], [0], [0], [1], [0, 0, 1, 1], [], []>} : vector<16x128xbf16>, vector<128x128xbf16>, vector<16x128xf32> -> vector<16x128xf32>
    %15 = arith.addf %10, %14 : vector<16x128xf32>
    %c0_12 = arith.constant 0 : index
    %c0_13 = arith.constant 0 : index
    %c0_14 = arith.constant 0 : index
    %c0_15 = arith.constant 0 : index
    %16 = vector.load %arg3[%c0_12, %c0_13, %c0_14, %c0_15] : memref<1x1x18x128xbf16, #tpu.memory_space<vmem>>, vector<1x1x18x128xbf16>
    %17 = vector.shape_cast %16 : vector<1x1x18x128xbf16> to vector<18x128xbf16>
    %18 = vector.extract_strided_slice %17 {offsets = [0, 0], sizes = [16, 128], strides = [1, 1]} : vector<18x128xbf16> to vector<16x128xbf16>
    %c3 = arith.constant 3 : index
    %c0_16 = arith.constant 0 : index
    %c0_17 = arith.constant 0 : index
    %19 = vector.load %arg5[%c3, %c0_16, %c0_17] : memref<9x128x128xbf16, #tpu.memory_space<vmem>>, vector<1x128x128xbf16>
    %20 = vector.shape_cast %19 : vector<1x128x128xbf16> to vector<128x128xbf16>
    %cst_18 = arith.constant dense<0.000000e+00> : vector<16x128xf32>
    %21 = tpu.matmul %18, %20, %cst_18 {dimension_numbers = #tpu.dot_dimension_numbers<[1], [0], [0], [1], [0, 0, 1, 1], [], []>} : vector<16x128xbf16>, vector<128x128xbf16>, vector<16x128xf32> -> vector<16x128xf32>
    %22 = arith.addf %15, %21 : vector<16x128xf32>
    %23 = vector.extract_strided_slice %17 {offsets = [1, 0], sizes = [16, 128], strides = [1, 1]} : vector<18x128xbf16> to vector<16x128xbf16>
    %c4 = arith.constant 4 : index
    %c0_19 = arith.constant 0 : index
    %c0_20 = arith.constant 0 : index
    %24 = vector.load %arg5[%c4, %c0_19, %c0_20] : memref<9x128x128xbf16, #tpu.memory_space<vmem>>, vector<1x128x128xbf16>
    %25 = vector.shape_cast %24 : vector<1x128x128xbf16> to vector<128x128xbf16>
    %cst_21 = arith.constant dense<0.000000e+00> : vector<16x128xf32>
    %26 = tpu.matmul %23, %25, %cst_21 {dimension_numbers = #tpu.dot_dimension_numbers<[1], [0], [0], [1], [0, 0, 1, 1], [], []>} : vector<16x128xbf16>, vector<128x128xbf16>, vector<16x128xf32> -> vector<16x128xf32>
    %27 = arith.addf %22, %26 : vector<16x128xf32>
    %28 = vector.extract_strided_slice %17 {offsets = [2, 0], sizes = [16, 128], strides = [1, 1]} : vector<18x128xbf16> to vector<16x128xbf16>
    %c5 = arith.constant 5 : index
    %c0_22 = arith.constant 0 : index
    %c0_23 = arith.constant 0 : index
    %29 = vector.load %arg5[%c5, %c0_22, %c0_23] : memref<9x128x128xbf16, #tpu.memory_space<vmem>>, vector<1x128x128xbf16>
    %30 = vector.shape_cast %29 : vector<1x128x128xbf16> to vector<128x128xbf16>
    %cst_24 = arith.constant dense<0.000000e+00> : vector<16x128xf32>
    %31 = tpu.matmul %28, %30, %cst_24 {dimension_numbers = #tpu.dot_dimension_numbers<[1], [0], [0], [1], [0, 0, 1, 1], [], []>} : vector<16x128xbf16>, vector<128x128xbf16>, vector<16x128xf32> -> vector<16x128xf32>
    %32 = arith.addf %27, %31 : vector<16x128xf32>
    %c0_25 = arith.constant 0 : index
    %c0_26 = arith.constant 0 : index
    %c0_27 = arith.constant 0 : index
    %c0_28 = arith.constant 0 : index
    %33 = vector.load %arg4[%c0_25, %c0_26, %c0_27, %c0_28] : memref<1x1x18x128xbf16, #tpu.memory_space<vmem>>, vector<1x1x18x128xbf16>
    %34 = vector.shape_cast %33 : vector<1x1x18x128xbf16> to vector<18x128xbf16>
    %35 = vector.extract_strided_slice %34 {offsets = [0, 0], sizes = [16, 128], strides = [1, 1]} : vector<18x128xbf16> to vector<16x128xbf16>
    %c6 = arith.constant 6 : index
    %c0_29 = arith.constant 0 : index
    %c0_30 = arith.constant 0 : index
    %36 = vector.load %arg5[%c6, %c0_29, %c0_30] : memref<9x128x128xbf16, #tpu.memory_space<vmem>>, vector<1x128x128xbf16>
    %37 = vector.shape_cast %36 : vector<1x128x128xbf16> to vector<128x128xbf16>
    %cst_31 = arith.constant dense<0.000000e+00> : vector<16x128xf32>
    %38 = tpu.matmul %35, %37, %cst_31 {dimension_numbers = #tpu.dot_dimension_numbers<[1], [0], [0], [1], [0, 0, 1, 1], [], []>} : vector<16x128xbf16>, vector<128x128xbf16>, vector<16x128xf32> -> vector<16x128xf32>
    %39 = arith.addf %32, %38 : vector<16x128xf32>
    %40 = vector.extract_strided_slice %34 {offsets = [1, 0], sizes = [16, 128], strides = [1, 1]} : vector<18x128xbf16> to vector<16x128xbf16>
    %c7 = arith.constant 7 : index
    %c0_32 = arith.constant 0 : index
    %c0_33 = arith.constant 0 : index
    %41 = vector.load %arg5[%c7, %c0_32, %c0_33] : memref<9x128x128xbf16, #tpu.memory_space<vmem>>, vector<1x128x128xbf16>
    %42 = vector.shape_cast %41 : vector<1x128x128xbf16> to vector<128x128xbf16>
    %cst_34 = arith.constant dense<0.000000e+00> : vector<16x128xf32>
    %43 = tpu.matmul %40, %42, %cst_34 {dimension_numbers = #tpu.dot_dimension_numbers<[1], [0], [0], [1], [0, 0, 1, 1], [], []>} : vector<16x128xbf16>, vector<128x128xbf16>, vector<16x128xf32> -> vector<16x128xf32>
    %44 = arith.addf %39, %43 : vector<16x128xf32>
    %45 = vector.extract_strided_slice %34 {offsets = [2, 0], sizes = [16, 128], strides = [1, 1]} : vector<18x128xbf16> to vector<16x128xbf16>
    %c8 = arith.constant 8 : index
    %c0_35 = arith.constant 0 : index
    %c0_36 = arith.constant 0 : index
    %46 = vector.load %arg5[%c8, %c0_35, %c0_36] : memref<9x128x128xbf16, #tpu.memory_space<vmem>>, vector<1x128x128xbf16>
    %47 = vector.shape_cast %46 : vector<1x128x128xbf16> to vector<128x128xbf16>
    %cst_37 = arith.constant dense<0.000000e+00> : vector<16x128xf32>
    %48 = tpu.matmul %45, %47, %cst_37 {dimension_numbers = #tpu.dot_dimension_numbers<[1], [0], [0], [1], [0, 0, 1, 1], [], []>} : vector<16x128xbf16>, vector<128x128xbf16>, vector<16x128xf32> -> vector<16x128xf32>
    %49 = arith.addf %44, %48 : vector<16x128xf32>
    %c0_38 = arith.constant 0 : index
    %c0_39 = arith.constant 0 : index
    %c0_40 = arith.constant 0 : index
    %c0_41 = arith.constant 0 : index
    %50 = vector.load %arg6[%c0_38, %c0_39, %c0_40, %c0_41] : memref<1x1x16x128xf32, #tpu.memory_space<vmem>>, vector<1x1x16x128xf32>
    %51 = vector.shape_cast %50 : vector<1x1x16x128xf32> to vector<16x128xf32>
    %52 = vector.shape_cast %49 : vector<16x128xf32> to vector<1x1x16x128xf32>
    tpu.vector_store %arg6[%c0_38, %c0_39, %c0_40, %c0_41], %52 {strides = array<i32>} : memref<1x1x16x128xf32, #tpu.memory_space<vmem>>, vector<1x1x16x128xf32>,
    %cst_42 = arith.constant dense<0.000000e+00> : vector<128xf32>
    %53 = vector.multi_reduction <add>, %49, %cst_42 [0] : vector<16x128xf32> to vector<128xf32>
    %54 = vector.shape_cast %53 : vector<128xf32> to vector<1x128xf32>
    %55 = arith.mulf %49, %49 : vector<16x128xf32>
    %cst_43 = arith.constant dense<0.000000e+00> : vector<128xf32>
    %56 = vector.multi_reduction <add>, %55, %cst_43 [0] : vector<16x128xf32> to vector<128xf32>
    %57 = vector.shape_cast %56 : vector<128xf32> to vector<1x128xf32>
    %c0_i32 = arith.constant 0 : i32
    %58 = arith.cmpi eq, %arg0, %c0_i32 : i32
    %c0_i32_44 = arith.constant 0 : i32
    %59 = arith.cmpi eq, %arg1, %c0_i32_44 : i32
    %60 = arith.andi %58, %59 : i1
    %61 = arith.extui %60 : i1 to i32
    %c0_i32_45 = arith.constant 0 : i32
    %62 = arith.cmpi ne, %61, %c0_i32_45 : i32
    scf.if %62 {
      %c0_47 = arith.constant 0 : index
      %c0_48 = arith.constant 0 : index
      %66 = vector.load %arg7[%c0_47, %c0_48] : memref<1x128xf32, #tpu.memory_space<vmem>>, vector<1x128xf32>
      tpu.vector_store %arg7[%c0_47, %c0_48], %54 {strides = array<i32>} : memref<1x128xf32, #tpu.memory_space<vmem>>, vector<1x128xf32>,
      %c0_49 = arith.constant 0 : index
      %c0_50 = arith.constant 0 : index
      %67 = vector.load %arg8[%c0_49, %c0_50] : memref<1x128xf32, #tpu.memory_space<vmem>>, vector<1x128xf32>
      tpu.vector_store %arg8[%c0_49, %c0_50], %57 {strides = array<i32>} : memref<1x128xf32, #tpu.memory_space<vmem>>, vector<1x128xf32>,
    } else {
    }
    %true = arith.constant true
    %63 = arith.xori %60, %true : i1
    %64 = arith.extui %63 : i1 to i32
    %c0_i32_46 = arith.constant 0 : i32
    %65 = arith.cmpi ne, %64, %c0_i32_46 : i32
    scf.if %65 {
      %c0_47 = arith.constant 0 : index
      %c0_48 = arith.constant 0 : index
      %66 = vector.load %arg7[%c0_47, %c0_48] : memref<1x128xf32, #tpu.memory_space<vmem>>, vector<1x128xf32>
      %67 = arith.addf %66, %54 : vector<1x128xf32>
      %c0_49 = arith.constant 0 : index
      %c0_50 = arith.constant 0 : index
      %68 = vector.load %arg7[%c0_49, %c0_50] : memref<1x128xf32, #tpu.memory_space<vmem>>, vector<1x128xf32>
      tpu.vector_store %arg7[%c0_49, %c0_50], %67 {strides = array<i32>} : memref<1x128xf32, #tpu.memory_space<vmem>>, vector<1x128xf32>,
      %c0_51 = arith.constant 0 : index
      %c0_52 = arith.constant 0 : index
      %69 = vector.load %arg8[%c0_51, %c0_52] : memref<1x128xf32, #tpu.memory_space<vmem>>, vector<1x128xf32>
      %70 = arith.addf %69, %57 : vector<1x128xf32>
      %c0_53 = arith.constant 0 : index
      %c0_54 = arith.constant 0 : index
      %71 = vector.load %arg8[%c0_53, %c0_54] : memref<1x128xf32, #tpu.memory_space<vmem>>, vector<1x128xf32>
      tpu.vector_store %arg8[%c0_53, %c0_54], %70 {strides = array<i32>} : memref<1x128xf32, #tpu.memory_space<vmem>>, vector<1x128xf32>,
    } else {
    }
    return
  }
  func.func @transform_0(%arg0: i32, %arg1: i32) -> (i32, i32, i32, i32) {
    %c1_i32 = arith.constant 1 : i32
    %0 = arith.muli %arg1, %c1_i32 : i32
    %c0_i32 = arith.constant 0 : i32
    %1 = arith.addi %0, %c0_i32 : i32
    %c0_i32_0 = arith.constant 0 : i32
    %c0_i32_1 = arith.constant 0 : i32
    %c0_i32_2 = arith.constant 0 : i32
    return %arg0, %1, %c0_i32_0, %c0_i32_1 : i32, i32, i32, i32
  }
  func.func @transform_1(%arg0: i32, %arg1: i32) -> (i32, i32, i32, i32) {
    %c1_i32 = arith.constant 1 : i32
    %0 = arith.muli %arg1, %c1_i32 : i32
    %c1_i32_0 = arith.constant 1 : i32
    %1 = arith.addi %0, %c1_i32_0 : i32
    %c0_i32 = arith.constant 0 : i32
    %c0_i32_1 = arith.constant 0 : i32
    %c0_i32_2 = arith.constant 0 : i32
    return %arg0, %1, %c0_i32, %c0_i32_1 : i32, i32, i32, i32
  }
  func.func @transform_2(%arg0: i32, %arg1: i32) -> (i32, i32, i32, i32) {
    %c1_i32 = arith.constant 1 : i32
    %0 = arith.muli %arg1, %c1_i32 : i32
    %c2_i32 = arith.constant 2 : i32
    %1 = arith.addi %0, %c2_i32 : i32
    %c0_i32 = arith.constant 0 : i32
    %c0_i32_0 = arith.constant 0 : i32
    %c0_i32_1 = arith.constant 0 : i32
    return %arg0, %1, %c0_i32, %c0_i32_0 : i32, i32, i32, i32
  }
  func.func @transform_3(%arg0: i32, %arg1: i32) -> (i32, i32, i32) {
    %c0_i32 = arith.constant 0 : i32
    %c0_i32_0 = arith.constant 0 : i32
    %c0_i32_1 = arith.constant 0 : i32
    %c0_i32_2 = arith.constant 0 : i32
    return %c0_i32, %c0_i32_0, %c0_i32_1 : i32, i32, i32
  }
  func.func @transform_4(%arg0: i32, %arg1: i32) -> (i32, i32, i32, i32) {
    %c0_i32 = arith.constant 0 : i32
    %c0_i32_0 = arith.constant 0 : i32
    %c0_i32_1 = arith.constant 0 : i32
    return %arg0, %arg1, %c0_i32, %c0_i32_0 : i32, i32, i32, i32
  }
  func.func @transform_5(%arg0: i32, %arg1: i32) -> (i32, i32) {
    %c0_i32 = arith.constant 0 : i32
    %c0_i32_0 = arith.constant 0 : i32
    %c0_i32_1 = arith.constant 0 : i32
    return %c0_i32, %c0_i32_0 : i32, i32
  }
  func.func @transform_6(%arg0: i32, %arg1: i32) -> (i32, i32) {
    %c0_i32 = arith.constant 0 : i32
    %c0_i32_0 = arith.constant 0 : i32
    %c0_i32_1 = arith.constant 0 : i32
    return %c0_i32, %c0_i32_0 : i32, i32
  }
}

module attributes {stable_mosaic.version = 11 : i64} {
  func.func @bn_apply_kernel(%arg0: i32, %arg1: memref<512x128xf32, #tpu.memory_space<vmem>>, %arg2: memref<1x128xf32, #tpu.memory_space<vmem>>, %arg3: memref<1x128xf32, #tpu.memory_space<vmem>>, %arg4: memref<1x128xf32, #tpu.memory_space<vmem>>, %arg5: memref<1x128xf32, #tpu.memory_space<vmem>>, %arg6: memref<512x128xf32, #tpu.memory_space<vmem>>) attributes {dimension_semantics = [#tpu.dimension_semantics<parallel>], iteration_bounds = array<i64: 1>, scalar_prefetch = 0 : i64, scratch_operands = 0 : i64, tpu.core_type = #tpu.core_type<tc>, window_params = [{transform_indices = @transform_0, window_bounds = array<i64: 512, 128>}, {pipeline_mode = #tpu.pipeline_mode<synchronous>, transform_indices = @transform_1, window_bounds = array<i64: 1, 128>}, {pipeline_mode = #tpu.pipeline_mode<synchronous>, transform_indices = @transform_2, window_bounds = array<i64: 1, 128>}, {pipeline_mode = #tpu.pipeline_mode<synchronous>, transform_indices = @transform_3, window_bounds = array<i64: 1, 128>}, {pipeline_mode = #tpu.pipeline_mode<synchronous>, transform_indices = @transform_4, window_bounds = array<i64: 1, 128>}, {transform_indices = @transform_5, window_bounds = array<i64: 512, 128>}]} {
    %c0 = arith.constant 0 : index
    %c0_0 = arith.constant 0 : index
    %0 = vector.load %arg2[%c0, %c0_0] : memref<1x128xf32, #tpu.memory_space<vmem>>, vector<1x128xf32>
    %cst = arith.constant 0.001953125 : f32
    %1 = vector.broadcast %cst : f32 to vector<1x128xf32>
    %2 = arith.mulf %0, %1 : vector<1x128xf32>
    %c0_1 = arith.constant 0 : index
    %c0_2 = arith.constant 0 : index
    %3 = vector.load %arg3[%c0_1, %c0_2] : memref<1x128xf32, #tpu.memory_space<vmem>>, vector<1x128xf32>
    %cst_3 = arith.constant 0.001953125 : f32
    %4 = vector.broadcast %cst_3 : f32 to vector<1x128xf32>
    %5 = arith.mulf %3, %4 : vector<1x128xf32>
    %6 = arith.mulf %2, %2 : vector<1x128xf32>
    %7 = arith.subf %5, %6 : vector<1x128xf32>
    %cst_4 = arith.constant 0.000000e+00 : f32
    %8 = vector.broadcast %cst_4 : f32 to vector<1x128xf32>
    %9 = arith.maximumf %7, %8 : vector<1x128xf32>
    %c0_5 = arith.constant 0 : index
    %c0_6 = arith.constant 0 : index
    %10 = vector.load %arg4[%c0_5, %c0_6] : memref<1x128xf32, #tpu.memory_space<vmem>>, vector<1x128xf32>
    %cst_7 = arith.constant 9.99999974E-6 : f32
    %11 = vector.broadcast %cst_7 : f32 to vector<1x128xf32>
    %12 = arith.addf %9, %11 : vector<1x128xf32>
    %13 = math.rsqrt %12 : vector<1x128xf32>
    %14 = arith.mulf %10, %13 : vector<1x128xf32>
    %c0_8 = arith.constant 0 : index
    %c0_9 = arith.constant 0 : index
    %15 = vector.load %arg5[%c0_8, %c0_9] : memref<1x128xf32, #tpu.memory_space<vmem>>, vector<1x128xf32>
    %16 = arith.mulf %2, %14 : vector<1x128xf32>
    %17 = arith.subf %15, %16 : vector<1x128xf32>
    %c0_10 = arith.constant 0 : index
    %c0_11 = arith.constant 0 : index
    %18 = vector.load %arg1[%c0_10, %c0_11] : memref<512x128xf32, #tpu.memory_space<vmem>>, vector<512x128xf32>
    %19 = vector.broadcast %14 : vector<1x128xf32> to vector<512x128xf32>
    %20 = arith.mulf %18, %19 : vector<512x128xf32>
    %21 = vector.broadcast %17 : vector<1x128xf32> to vector<512x128xf32>
    %22 = arith.addf %20, %21 : vector<512x128xf32>
    %cst_12 = arith.constant 0.000000e+00 : f32
    %23 = vector.broadcast %cst_12 : f32 to vector<512x128xf32>
    %24 = arith.maximumf %22, %23 : vector<512x128xf32>
    %c0_13 = arith.constant 0 : index
    %c0_14 = arith.constant 0 : index
    %25 = vector.load %arg6[%c0_13, %c0_14] : memref<512x128xf32, #tpu.memory_space<vmem>>, vector<512x128xf32>
    tpu.vector_store %arg6[%c0_13, %c0_14], %24 {strides = array<i32>} : memref<512x128xf32, #tpu.memory_space<vmem>>, vector<512x128xf32>,
    return
  }
  func.func @transform_0(%arg0: i32) -> (i32, i32) {
    %c0_i32 = arith.constant 0 : i32
    %c0_i32_0 = arith.constant 0 : i32
    return %arg0, %c0_i32 : i32, i32
  }
  func.func @transform_1(%arg0: i32) -> (i32, i32) {
    %c0_i32 = arith.constant 0 : i32
    %c0_i32_0 = arith.constant 0 : i32
    %c0_i32_1 = arith.constant 0 : i32
    return %c0_i32, %c0_i32_0 : i32, i32
  }
  func.func @transform_2(%arg0: i32) -> (i32, i32) {
    %c0_i32 = arith.constant 0 : i32
    %c0_i32_0 = arith.constant 0 : i32
    %c0_i32_1 = arith.constant 0 : i32
    return %c0_i32, %c0_i32_0 : i32, i32
  }
  func.func @transform_3(%arg0: i32) -> (i32, i32) {
    %c0_i32 = arith.constant 0 : i32
    %c0_i32_0 = arith.constant 0 : i32
    %c0_i32_1 = arith.constant 0 : i32
    return %c0_i32, %c0_i32_0 : i32, i32
  }
  func.func @transform_4(%arg0: i32) -> (i32, i32) {
    %c0_i32 = arith.constant 0 : i32
    %c0_i32_0 = arith.constant 0 : i32
    %c0_i32_1 = arith.constant 0 : i32
    return %c0_i32, %c0_i32_0 : i32, i32
  }
  func.func @transform_5(%arg0: i32) -> (i32, i32) {
    %c0_i32 = arith.constant 0 : i32
    %c0_i32_0 = arith.constant 0 : i32
    return %arg0, %c0_i32 : i32, i32
  }
}

</mosaic_0001>

<llo_original>
// kernel: dual_conv_bn_relu_forward.7
$region0: #{dual_conv_bn_relu_forward.7}
  #allocation0 [shape = 'u32[]', space=smem, size = 0x4, offset = 0x4, fixed_abs, tag = 'smem constant byte address 0x4 - core index']
  #allocation1 [shape = 'u32[144,128]{1,0:T(1,128)}', space=vmem, size = 0x12000, scoped, tag = 'internal scratch']
  %s0 = inlined_call_operand.vmem [shape: f32[512,128], index: 0, kind: input, shape index: {}]
  %s1 = inlined_call_operand.vmem [shape: f32[1,128], index: 1, kind: input, shape index: {}]
  %s2 = inlined_call_operand.vmem [shape: f32[1,128], index: 2, kind: input, shape index: {}]
  %s3 = inlined_call_operand.vmem [shape: f32[1,128], index: 3, kind: input, shape index: {}]
  %s4 = inlined_call_operand.vmem [shape: f32[1,128], index: 4, kind: input, shape index: {}]
  %s5 = inlined_call_operand.vmem [shape: f32[512,128], index: 5, kind: output, shape index: {}]
  %s6 = sld [smem:[#allocation0]]
  $region30: #{dual_conv_bn_relu_forward.7} parent=0
    _
  %s8 = ssub.s32 1, %s6
  %s9 = scalar_select 0, %s8, %s6
  // Predicated region
  $region2: #{dual_conv_bn_relu_forward.7} parent=0 // pred_check
    _
  $region3: #{dual_conv_bn_relu_forward.7} parent=0 // pred_check_branch
    %11 = sbr.rel (0) target = $region5
  $region4: #{dual_conv_bn_relu_forward.7} parent=0 // pred_region
    _
  $region5: #{dual_conv_bn_relu_forward.7} parent=0 // pred_fallthru
    _
  // Predicated region
  $region6: #{dual_conv_bn_relu_forward.7} parent=0 // pred_check
    _
  $region7: #{dual_conv_bn_relu_forward.7} parent=0 // pred_check_branch
    %13 = sbr.rel (0) target = $region9
  $region8: #{dual_conv_bn_relu_forward.7} parent=0 // pred_region
    _
  $region9: #{dual_conv_bn_relu_forward.7} parent=0 // pred_fallthru
    _
  // Predicated region
  $region10: #{dual_conv_bn_relu_forward.7} parent=0 // pred_check
    _
  $region11: #{dual_conv_bn_relu_forward.7} parent=0 // pred_check_branch
    %15 = sbr.rel (0) target = $region13
  $region12: #{dual_conv_bn_relu_forward.7} parent=0 // pred_region
    _
  $region13: #{dual_conv_bn_relu_forward.7} parent=0 // pred_fallthru
    _
  // Predicated region
  $region14: #{dual_conv_bn_relu_forward.7} parent=0 // pred_check
    _
  $region15: #{dual_conv_bn_relu_forward.7} parent=0 // pred_check_branch
    %17 = sbr.rel (0) target = $region17
  $region16: #{dual_conv_bn_relu_forward.7} parent=0 // pred_region
    _
  $region17: #{dual_conv_bn_relu_forward.7} parent=0 // pred_fallthru
    _
  // Predicated region
  $region18: #{dual_conv_bn_relu_forward.7} parent=0 // pred_check
    _
  $region19: #{dual_conv_bn_relu_forward.7} parent=0 // pred_check_branch
    %19 = sbr.rel (0) target = $region21
  $region20: #{dual_conv_bn_relu_forward.7} parent=0 // pred_region
    _
  $region21: #{dual_conv_bn_relu_forward.7} parent=0 // pred_fallthru
    _
  %v20 = vld [vmem:[%s1] sm:$0x1]
  %v21 = vmul.f32 %v20, 0.001953125
  %v22 = vld [vmem:[%s2] sm:$0x1]
  %v23 = vmul.f32 %v22, 0.001953125
  %v24 = vmul.f32 %v21, %v21
  %v25 = vsub.f32 %v23, %v24
  %v26 = vmax.f32 %v25, 0.0
  %v27 = vld [vmem:[%s3] sm:$0x1]
  %v28 = vadd.f32 %v26, 1e-05
  %v29 = vrsqrt.pop %v28
  %v30 = vmul.f32 %v27, %v29
  %v31 = vld [vmem:[%s4] sm:$0x1]
  %v32 = vmul.f32 %v21, %v30
  %v33 = vsub.f32 %v31, %v32
  %v34 = vld [vmem:[%s0] sm:$0xff]
  %v35 = vld [vmem:[%s0 + $0x8] sm:$0xff]
  %v36 = vld [vmem:[%s0 + $0x10] sm:$0xff]
  %v37 = vld [vmem:[%s0 + $0x18] sm:$0xff]
  %v38 = vld [vmem:[%s0 + $0x20] sm:$0xff]
  %v39 = vld [vmem:[%s0 + $0x28] sm:$0xff]
  %v40 = vld [vmem:[%s0 + $0x30] sm:$0xff]
  %v41 = vld [vmem:[%s0 + $0x38] sm:$0xff]
  %v42 = vld [vmem:[%s0 + $0x40] sm:$0xff]
  %v43 = vld [vmem:[%s0 + $0x48] sm:$0xff]
  %v44 = vld [vmem:[%s0 + $0x50] sm:$0xff]
  %v45 = vld [vmem:[%s0 + $0x58] sm:$0xff]
  %v46 = vld [vmem:[%s0 + $0x60] sm:$0xff]
  %v47 = vld [vmem:[%s0 + $0x68] sm:$0xff]
  %v48 = vld [vmem:[%s0 + $0x70] sm:$0xff]
  %v49 = vld [vmem:[%s0 + $0x78] sm:$0xff]
  %v50 = vld [vmem:[%s0 + $0x80] sm:$0xff]
  %v51 = vld [vmem:[%s0 + $0x88] sm:$0xff]
  %v52 = vld [vmem:[%s0 + $0x90] sm:$0xff]
  %v53 = vld [vmem:[%s0 + $0x98] sm:$0xff]
  %v54 = vld [vmem:[%s0 + $0xa0] sm:$0xff]
  %v55 = vld [vmem:[%s0 + $0xa8] sm:$0xff]
  %v56 = vld [vmem:[%s0 + $0xb0] sm:$0xff]
  %v57 = vld [vmem:[%s0 + $0xb8] sm:$0xff]
  %v58 = vld [vmem:[%s0 + $0xc0] sm:$0xff]
  %v59 = vld [vmem:[%s0 + $0xc8] sm:$0xff]
  %v60 = vld [vmem:[%s0 + $0xd0] sm:$0xff]
  %v61 = vld [vmem:[%s0 + $0xd8] sm:$0xff]
  %v62 = vld [vmem:[%s0 + $0xe0] sm:$0xff]
  %v63 = vld [vmem:[%s0 + $0xe8] sm:$0xff]
  %v64 = vld [vmem:[%s0 + $0xf0] sm:$0xff]
  %v65 = vld [vmem:[%s0 + $0xf8] sm:$0xff]
  %v66 = vld [vmem:[%s0 + $0x100] sm:$0xff]
  %v67 = vld [vmem:[%s0 + $0x108] sm:$0xff]
  %v68 = vld [vmem:[%s0 + $0x110] sm:$0xff]
  %v69 = vld [vmem:[%s0 + $0x118] sm:$0xff]
  %v70 = vld [vmem:[%s0 + $0x120] sm:$0xff]
  %v71 = vld [vmem:[%s0 + $0x128] sm:$0xff]
  %v72 = vld [vmem:[%s0 + $0x130] sm:$0xff]
  %v73 = vld [vmem:[%s0 + $0x138] sm:$0xff]
  %v74 = vld [vmem:[%s0 + $0x140] sm:$0xff]
  %v75 = vld [vmem:[%s0 + $0x148] sm:$0xff]
  %v76 = vld [vmem:[%s0 + $0x150] sm:$0xff]
  %v77 = vld [vmem:[%s0 + $0x158] sm:$0xff]
  %v78 = vld [vmem:[%s0 + $0x160] sm:$0xff]
  %v79 = vld [vmem:[%s0 + $0x168] sm:$0xff]
  %v80 = vld [vmem:[%s0 + $0x170] sm:$0xff]
  %v81 = vld [vmem:[%s0 + $0x178] sm:$0xff]
  %v82 = vld [vmem:[%s0 + $0x180] sm:$0xff]
  %v83 = vld [vmem:[%s0 + $0x188] sm:$0xff]
  %v84 = vld [vmem:[%s0 + $0x190] sm:$0xff]
  %v85 = vld [vmem:[%s0 + $0x198] sm:$0xff]
  %v86 = vld [vmem:[%s0 + $0x1a0] sm:$0xff]
  %v87 = vld [vmem:[%s0 + $0x1a8] sm:$0xff]
  %v88 = vld [vmem:[%s0 + $0x1b0] sm:$0xff]
  %v89 = vld [vmem:[%s0 + $0x1b8] sm:$0xff]
  %v90 = vld [vmem:[%s0 + $0x1c0] sm:$0xff]
  %v91 = vld [vmem:[%s0 + $0x1c8] sm:$0xff]
  %v92 = vld [vmem:[%s0 + $0x1d0] sm:$0xff]
  %v93 = vld [vmem:[%s0 + $0x1d8] sm:$0xff]
  %v94 = vld [vmem:[%s0 + $0x1e0] sm:$0xff]
  %v95 = vld [vmem:[%s0 + $0x1e8] sm:$0xff]
  %v96 = vld [vmem:[%s0 + $0x1f0] sm:$0xff]
  %v97 = vld [vmem:[%s0 + $0x1f8] sm:$0xff]
  %v99 = vlaneseq
  %v100 = vshrl.u32 %v99, 7
  %v101 = vsub.s32 0, %v100
  %v102 = vrot.slane %v30, %v101
  %v104 = vmul.f32 %v34, %v102
  %v105 = vmul.f32 %v35, %v102
  %v106 = vmul.f32 %v36, %v102
  %v107 = vmul.f32 %v37, %v102
  %v108 = vmul.f32 %v38, %v102
  %v109 = vmul.f32 %v39, %v102
  %v110 = vmul.f32 %v40, %v102
  %v111 = vmul.f32 %v41, %v102
  %v112 = vmul.f32 %v42, %v102
  %v113 = vmul.f32 %v43, %v102
  %v114 = vmul.f32 %v44, %v102
  %v115 = vmul.f32 %v45, %v102
  %v116 = vmul.f32 %v46, %v102
  %v117 = vmul.f32 %v47, %v102
  %v118 = vmul.f32 %v48, %v102
  %v119 = vmul.f32 %v49, %v102
  %v120 = vmul.f32 %v50, %v102
  %v121 = vmul.f32 %v51, %v102
  %v122 = vmul.f32 %v52, %v102
  %v123 = vmul.f32 %v53, %v102
  %v124 = vmul.f32 %v54, %v102
  %v125 = vmul.f32 %v55, %v102
  %v126 = vmul.f32 %v56, %v102
  %v127 = vmul.f32 %v57, %v102
  %v128 = vmul.f32 %v58, %v102
  %v129 = vmul.f32 %v59, %v102
  %v130 = vmul.f32 %v60, %v102
  %v131 = vmul.f32 %v61, %v102
  %v132 = vmul.f32 %v62, %v102
  %v133 = vmul.f32 %v63, %v102
  %v134 = vmul.f32 %v64, %v102
  %v135 = vmul.f32 %v65, %v102
  %v136 = vmul.f32 %v66, %v102
  %v137 = vmul.f32 %v67, %v102
  %v138 = vmul.f32 %v68, %v102
  %v139 = vmul.f32 %v69, %v102
  %v140 = vmul.f32 %v70, %v102
  %v141 = vmul.f32 %v71, %v102
  %v142 = vmul.f32 %v72, %v102
  %v143 = vmul.f32 %v73, %v102
  %v144 = vmul.f32 %v74, %v102
  %v145 = vmul.f32 %v75, %v102
  %v146 = vmul.f32 %v76, %v102
  %v147 = vmul.f32 %v77, %v102
  %v148 = vmul.f32 %v78, %v102
  %v149 = vmul.f32 %v79, %v102
  %v150 = vmul.f32 %v80, %v102
  %v151 = vmul.f32 %v81, %v102
  %v152 = vmul.f32 %v82, %v102
  %v153 = vmul.f32 %v83, %v102
  %v154 = vmul.f32 %v84, %v102
  %v155 = vmul.f32 %v85, %v102
  %v156 = vmul.f32 %v86, %v102
  %v157 = vmul.f32 %v87, %v102
  %v158 = vmul.f32 %v88, %v102
  %v159 = vmul.f32 %v89, %v102
  %v160 = vmul.f32 %v90, %v102
  %v161 = vmul.f32 %v91, %v102
  %v162 = vmul.f32 %v92, %v102
  %v163 = vmul.f32 %v93, %v102
  %v164 = vmul.f32 %v94, %v102
  %v165 = vmul.f32 %v95, %v102
  %v166 = vmul.f32 %v96, %v102
  %v167 = vmul.f32 %v97, %v102
  %v169 = vlaneseq
  %v170 = vshrl.u32 %v169, 7
  %v171 = vsub.s32 0, %v170
  %v172 = vrot.slane %v33, %v171
  %v174 = vadd.f32 %v104, %v172
  %v175 = vadd.f32 %v105, %v172
  %v176 = vadd.f32 %v106, %v172
  %v177 = vadd.f32 %v107, %v172
  %v178 = vadd.f32 %v108, %v172
  %v179 = vadd.f32 %v109, %v172
  %v180 = vadd.f32 %v110, %v172
  %v181 = vadd.f32 %v111, %v172
  %v182 = vadd.f32 %v112, %v172
  %v183 = vadd.f32 %v113, %v172
  %v184 = vadd.f32 %v114, %v172
  %v185 = vadd.f32 %v115, %v172
  %v186 = vadd.f32 %v116, %v172
  %v187 = vadd.f32 %v117, %v172
  %v188 = vadd.f32 %v118, %v172
  %v189 = vadd.f32 %v119, %v172
  %v190 = vadd.f32 %v120, %v172
  %v191 = vadd.f32 %v121, %v172
  %v192 = vadd.f32 %v122, %v172
  %v193 = vadd.f32 %v123, %v172
  %v194 = vadd.f32 %v124, %v172
  %v195 = vadd.f32 %v125, %v172
  %v196 = vadd.f32 %v126, %v172
  %v197 = vadd.f32 %v127, %v172
  %v198 = vadd.f32 %v128, %v172
  %v199 = vadd.f32 %v129, %v172
  %v200 = vadd.f32 %v130, %v172
  %v201 = vadd.f32 %v131, %v172
  %v202 = vadd.f32 %v132, %v172
  %v203 = vadd.f32 %v133, %v172
  %v204 = vadd.f32 %v134, %v172
  %v205 = vadd.f32 %v135, %v172
  %v206 = vadd.f32 %v136, %v172
  %v207 = vadd.f32 %v137, %v172
  %v208 = vadd.f32 %v138, %v172
  %v209 = vadd.f32 %v139, %v172
  %v210 = vadd.f32 %v140, %v172
  %v211 = vadd.f32 %v141, %v172
  %v212 = vadd.f32 %v142, %v172
  %v213 = vadd.f32 %v143, %v172
  %v214 = vadd.f32 %v144, %v172
  %v215 = vadd.f32 %v145, %v172
  %v216 = vadd.f32 %v146, %v172
  %v217 = vadd.f32 %v147, %v172
  %v218 = vadd.f32 %v148, %v172
  %v219 = vadd.f32 %v149, %v172
  %v220 = vadd.f32 %v150, %v172
  %v221 = vadd.f32 %v151, %v172
  %v222 = vadd.f32 %v152, %v172
  %v223 = vadd.f32 %v153, %v172
  %v224 = vadd.f32 %v154, %v172
  %v225 = vadd.f32 %v155, %v172
  %v226 = vadd.f32 %v156, %v172
  %v227 = vadd.f32 %v157, %v172
  %v228 = vadd.f32 %v158, %v172
  %v229 = vadd.f32 %v159, %v172
  %v230 = vadd.f32 %v160, %v172
  %v231 = vadd.f32 %v161, %v172
  %v232 = vadd.f32 %v162, %v172
  %v233 = vadd.f32 %v163, %v172
  %v234 = vadd.f32 %v164, %v172
  %v235 = vadd.f32 %v165, %v172
  %v236 = vadd.f32 %v166, %v172
  %v237 = vadd.f32 %v167, %v172
  %v238 = vmax.f32 %v174, 0.0
  %v239 = vmax.f32 %v175, 0.0
  %v240 = vmax.f32 %v176, 0.0
  %v241 = vmax.f32 %v177, 0.0
  %v242 = vmax.f32 %v178, 0.0
  %v243 = vmax.f32 %v179, 0.0
  %v244 = vmax.f32 %v180, 0.0
  %v245 = vmax.f32 %v181, 0.0
  %v246 = vmax.f32 %v182, 0.0
  %v247 = vmax.f32 %v183, 0.0
  %v248 = vmax.f32 %v184, 0.0
  %v249 = vmax.f32 %v185, 0.0
  %v250 = vmax.f32 %v186, 0.0
  %v251 = vmax.f32 %v187, 0.0
  %v252 = vmax.f32 %v188, 0.0
  %v253 = vmax.f32 %v189, 0.0
  %v254 = vmax.f32 %v190, 0.0
  %v255 = vmax.f32 %v191, 0.0
  %v256 = vmax.f32 %v192, 0.0
  %v257 = vmax.f32 %v193, 0.0
  %v258 = vmax.f32 %v194, 0.0
  %v259 = vmax.f32 %v195, 0.0
  %v260 = vmax.f32 %v196, 0.0
  %v261 = vmax.f32 %v197, 0.0
  %v262 = vmax.f32 %v198, 0.0
  %v263 = vmax.f32 %v199, 0.0
  %v264 = vmax.f32 %v200, 0.0
  %v265 = vmax.f32 %v201, 0.0
  %v266 = vmax.f32 %v202, 0.0
  %v267 = vmax.f32 %v203, 0.0
  %v268 = vmax.f32 %v204, 0.0
  %v269 = vmax.f32 %v205, 0.0
  %v270 = vmax.f32 %v206, 0.0
  %v271 = vmax.f32 %v207, 0.0
  %v272 = vmax.f32 %v208, 0.0
  %v273 = vmax.f32 %v209, 0.0
  %v274 = vmax.f32 %v210, 0.0
  %v275 = vmax.f32 %v211, 0.0
  %v276 = vmax.f32 %v212, 0.0
  %v277 = vmax.f32 %v213, 0.0
  %v278 = vmax.f32 %v214, 0.0
  %v279 = vmax.f32 %v215, 0.0
  %v280 = vmax.f32 %v216, 0.0
  %v281 = vmax.f32 %v217, 0.0
  %v282 = vmax.f32 %v218, 0.0
  %v283 = vmax.f32 %v219, 0.0
  %v284 = vmax.f32 %v220, 0.0
  %v285 = vmax.f32 %v221, 0.0
  %v286 = vmax.f32 %v222, 0.0
  %v287 = vmax.f32 %v223, 0.0
  %v288 = vmax.f32 %v224, 0.0
  %v289 = vmax.f32 %v225, 0.0
  %v290 = vmax.f32 %v226, 0.0
  %v291 = vmax.f32 %v227, 0.0
  %v292 = vmax.f32 %v228, 0.0
  %v293 = vmax.f32 %v229, 0.0
  %v294 = vmax.f32 %v230, 0.0
  %v295 = vmax.f32 %v231, 0.0
  %v296 = vmax.f32 %v232, 0.0
  %v297 = vmax.f32 %v233, 0.0
  %v298 = vmax.f32 %v234, 0.0
  %v299 = vmax.f32 %v235, 0.0
  %v300 = vmax.f32 %v236, 0.0
  %v301 = vmax.f32 %v237, 0.0
  %302 = vst [vmem:[%s5] sm:$0xff] %v238
  %303 = vst [vmem:[%s5 + $0x8] sm:$0xff] %v239
  %304 = vst [vmem:[%s5 + $0x10] sm:$0xff] %v240
  %305 = vst [vmem:[%s5 + $0x18] sm:$0xff] %v241
  %306 = vst [vmem:[%s5 + $0x20] sm:$0xff] %v242
  %307 = vst [vmem:[%s5 + $0x28] sm:$0xff] %v243
  %308 = vst [vmem:[%s5 + $0x30] sm:$0xff] %v244
  %309 = vst [vmem:[%s5 + $0x38] sm:$0xff] %v245
  %310 = vst [vmem:[%s5 + $0x40] sm:$0xff] %v246
  %311 = vst [vmem:[%s5 + $0x48] sm:$0xff] %v247
  %312 = vst [vmem:[%s5 + $0x50] sm:$0xff] %v248
  %313 = vst [vmem:[%s5 + $0x58] sm:$0xff] %v249
  %314 = vst [vmem:[%s5 + $0x60] sm:$0xff] %v250
  %315 = vst [vmem:[%s5 + $0x68] sm:$0xff] %v251
  %316 = vst [vmem:[%s5 + $0x70] sm:$0xff] %v252
  %317 = vst [vmem:[%s5 + $0x78] sm:$0xff] %v253
  %318 = vst [vmem:[%s5 + $0x80] sm:$0xff] %v254
  %319 = vst [vmem:[%s5 + $0x88] sm:$0xff] %v255
  %320 = vst [vmem:[%s5 + $0x90] sm:$0xff] %v256
  %321 = vst [vmem:[%s5 + $0x98] sm:$0xff] %v257
  %322 = vst [vmem:[%s5 + $0xa0] sm:$0xff] %v258
  %323 = vst [vmem:[%s5 + $0xa8] sm:$0xff] %v259
  %324 = vst [vmem:[%s5 + $0xb0] sm:$0xff] %v260
  %325 = vst [vmem:[%s5 + $0xb8] sm:$0xff] %v261
  %326 = vst [vmem:[%s5 + $0xc0] sm:$0xff] %v262
  %327 = vst [vmem:[%s5 + $0xc8] sm:$0xff] %v263
  %328 = vst [vmem:[%s5 + $0xd0] sm:$0xff] %v264
  %329 = vst [vmem:[%s5 + $0xd8] sm:$0xff] %v265
  %330 = vst [vmem:[%s5 + $0xe0] sm:$0xff] %v266
  %331 = vst [vmem:[%s5 + $0xe8] sm:$0xff] %v267
  %332 = vst [vmem:[%s5 + $0xf0] sm:$0xff] %v268
  %333 = vst [vmem:[%s5 + $0xf8] sm:$0xff] %v269
  %334 = vst [vmem:[%s5 + $0x100] sm:$0xff] %v270
  %335 = vst [vmem:[%s5 + $0x108] sm:$0xff] %v271
  %336 = vst [vmem:[%s5 + $0x110] sm:$0xff] %v272
  %337 = vst [vmem:[%s5 + $0x118] sm:$0xff] %v273
  %338 = vst [vmem:[%s5 + $0x120] sm:$0xff] %v274
  %339 = vst [vmem:[%s5 + $0x128] sm:$0xff] %v275
  %340 = vst [vmem:[%s5 + $0x130] sm:$0xff] %v276
  %341 = vst [vmem:[%s5 + $0x138] sm:$0xff] %v277
  %342 = vst [vmem:[%s5 + $0x140] sm:$0xff] %v278
  %343 = vst [vmem:[%s5 + $0x148] sm:$0xff] %v279
  %344 = vst [vmem:[%s5 + $0x150] sm:$0xff] %v280
  %345 = vst [vmem:[%s5 + $0x158] sm:$0xff] %v281
  %346 = vst [vmem:[%s5 + $0x160] sm:$0xff] %v282
  %347 = vst [vmem:[%s5 + $0x168] sm:$0xff] %v283
  %348 = vst [vmem:[%s5 + $0x170] sm:$0xff] %v284
  %349 = vst [vmem:[%s5 + $0x178] sm:$0xff] %v285
  %350 = vst [vmem:[%s5 + $0x180] sm:$0xff] %v286
  %351 = vst [vmem:[%s5 + $0x188] sm:$0xff] %v287
  %352 = vst [vmem:[%s5 + $0x190] sm:$0xff] %v288
  %353 = vst [vmem:[%s5 + $0x198] sm:$0xff] %v289
  %354 = vst [vmem:[%s5 + $0x1a0] sm:$0xff] %v290
  %355 = vst [vmem:[%s5 + $0x1a8] sm:$0xff] %v291
  %356 = vst [vmem:[%s5 + $0x1b0] sm:$0xff] %v292
  %357 = vst [vmem:[%s5 + $0x1b8] sm:$0xff] %v293
  %358 = vst [vmem:[%s5 + $0x1c0] sm:$0xff] %v294
  %359 = vst [vmem:[%s5 + $0x1c8] sm:$0xff] %v295
  %360 = vst [vmem:[%s5 + $0x1d0] sm:$0xff] %v296
  %361 = vst [vmem:[%s5 + $0x1d8] sm:$0xff] %v297
  %362 = vst [vmem:[%s5 + $0x1e0] sm:$0xff] %v298
  %363 = vst [vmem:[%s5 + $0x1e8] sm:$0xff] %v299
  %364 = vst [vmem:[%s5 + $0x1f0] sm:$0xff] %v300
  %365 = vst [vmem:[%s5 + $0x1f8] sm:$0xff] %v301
  // Predicated region
  $region22: #{dual_conv_bn_relu_forward.7} parent=0 // pred_check
    _
  $region23: #{dual_conv_bn_relu_forward.7} parent=0 // pred_check_branch
    %367 = sbr.rel (0) target = $region25
  $region24: #{dual_conv_bn_relu_forward.7} parent=0 // pred_region
    _
  $region25: #{dual_conv_bn_relu_forward.7} parent=0 // pred_fallthru
    _
  // Predicated region
  $region26: #{dual_conv_bn_relu_forward.7} parent=0 // pred_check
    _
  $region27: #{dual_conv_bn_relu_forward.7} parent=0 // pred_check_branch
    %369 = sbr.rel (0) target = $region29
  $region28: #{dual_conv_bn_relu_forward.7} parent=0 // pred_region
    _
  $region29: #{dual_conv_bn_relu_forward.7} parent=0 // pred_fallthru
    _

// kernel: dual_conv_bn_relu_forward.5
$region0: #{dual_conv_bn_relu_forward.5}
  #allocation0 [shape = 'u32[]', space=smem, size = 0x4, offset = 0x4, fixed_abs, tag = 'smem constant byte address 0x4 - core index']
  #allocation1 [shape = 'u32[144,128]{1,0:T(1,128)}', space=vmem, size = 0x12000, scoped, tag = 'internal scratch']
  %s0 = inlined_call_operand.vmem [shape: f32[512,128], index: 0, kind: input, shape index: {}]
  %s1 = inlined_call_operand.vmem [shape: f32[1,128], index: 1, kind: input, shape index: {}]
  %s2 = inlined_call_operand.vmem [shape: f32[1,128], index: 2, kind: input, shape index: {}]
  %s3 = inlined_call_operand.vmem [shape: f32[1,128], index: 3, kind: input, shape index: {}]
  %s4 = inlined_call_operand.vmem [shape: f32[1,128], index: 4, kind: input, shape index: {}]
  %s5 = inlined_call_operand.vmem [shape: bf16[512,128], index: 5, kind: output, shape index: {}]
  %s6 = sld [smem:[#allocation0]]
  $region30: #{dual_conv_bn_relu_forward.5} parent=0
    _
  %s8 = ssub.s32 1, %s6
  %s9 = scalar_select 0, %s8, %s6
  // Predicated region
  $region2: #{dual_conv_bn_relu_forward.5} parent=0 // pred_check
    _
  $region3: #{dual_conv_bn_relu_forward.5} parent=0 // pred_check_branch
    %11 = sbr.rel (0) target = $region5
  $region4: #{dual_conv_bn_relu_forward.5} parent=0 // pred_region
    _
  $region5: #{dual_conv_bn_relu_forward.5} parent=0 // pred_fallthru
    _
  // Predicated region
  $region6: #{dual_conv_bn_relu_forward.5} parent=0 // pred_check
    _
  $region7: #{dual_conv_bn_relu_forward.5} parent=0 // pred_check_branch
    %13 = sbr.rel (0) target = $region9
  $region8: #{dual_conv_bn_relu_forward.5} parent=0 // pred_region
    _
  $region9: #{dual_conv_bn_relu_forward.5} parent=0 // pred_fallthru
    _
  // Predicated region
  $region10: #{dual_conv_bn_relu_forward.5} parent=0 // pred_check
    _
  $region11: #{dual_conv_bn_relu_forward.5} parent=0 // pred_check_branch
    %15 = sbr.rel (0) target = $region13
  $region12: #{dual_conv_bn_relu_forward.5} parent=0 // pred_region
    _
  $region13: #{dual_conv_bn_relu_forward.5} parent=0 // pred_fallthru
    _
  // Predicated region
  $region14: #{dual_conv_bn_relu_forward.5} parent=0 // pred_check
    _
  $region15: #{dual_conv_bn_relu_forward.5} parent=0 // pred_check_branch
    %17 = sbr.rel (0) target = $region17
  $region16: #{dual_conv_bn_relu_forward.5} parent=0 // pred_region
    _
  $region17: #{dual_conv_bn_relu_forward.5} parent=0 // pred_fallthru
    _
  // Predicated region
  $region18: #{dual_conv_bn_relu_forward.5} parent=0 // pred_check
    _
  $region19: #{dual_conv_bn_relu_forward.5} parent=0 // pred_check_branch
    %19 = sbr.rel (0) target = $region21
  $region20: #{dual_conv_bn_relu_forward.5} parent=0 // pred_region
    _
  $region21: #{dual_conv_bn_relu_forward.5} parent=0 // pred_fallthru
    _
  %v20 = vld [vmem:[%s1] sm:$0x1]
  %v21 = vmul.f32 %v20, 0.001953125
  %v22 = vld [vmem:[%s2] sm:$0x1]
  %v23 = vmul.f32 %v22, 0.001953125
  %v24 = vmul.f32 %v21, %v21
  %v25 = vsub.f32 %v23, %v24
  %v26 = vmax.f32 %v25, 0.0
  %v27 = vld [vmem:[%s3] sm:$0x1]
  %v28 = vadd.f32 %v26, 1e-05
  %v29 = vrsqrt.pop %v28
  %v30 = vmul.f32 %v27, %v29
  %v31 = vld [vmem:[%s4] sm:$0x1]
  %v32 = vmul.f32 %v21, %v30
  %v33 = vsub.f32 %v31, %v32
  %v34 = vld [vmem:[%s0] sm:$0xff]
  %v35 = vld [vmem:[%s0 + $0x8] sm:$0xff]
  %v36 = vld [vmem:[%s0 + $0x10] sm:$0xff]
  %v37 = vld [vmem:[%s0 + $0x18] sm:$0xff]
  %v38 = vld [vmem:[%s0 + $0x20] sm:$0xff]
  %v39 = vld [vmem:[%s0 + $0x28] sm:$0xff]
  %v40 = vld [vmem:[%s0 + $0x30] sm:$0xff]
  %v41 = vld [vmem:[%s0 + $0x38] sm:$0xff]
  %v42 = vld [vmem:[%s0 + $0x40] sm:$0xff]
  %v43 = vld [vmem:[%s0 + $0x48] sm:$0xff]
  %v44 = vld [vmem:[%s0 + $0x50] sm:$0xff]
  %v45 = vld [vmem:[%s0 + $0x58] sm:$0xff]
  %v46 = vld [vmem:[%s0 + $0x60] sm:$0xff]
  %v47 = vld [vmem:[%s0 + $0x68] sm:$0xff]
  %v48 = vld [vmem:[%s0 + $0x70] sm:$0xff]
  %v49 = vld [vmem:[%s0 + $0x78] sm:$0xff]
  %v50 = vld [vmem:[%s0 + $0x80] sm:$0xff]
  %v51 = vld [vmem:[%s0 + $0x88] sm:$0xff]
  %v52 = vld [vmem:[%s0 + $0x90] sm:$0xff]
  %v53 = vld [vmem:[%s0 + $0x98] sm:$0xff]
  %v54 = vld [vmem:[%s0 + $0xa0] sm:$0xff]
  %v55 = vld [vmem:[%s0 + $0xa8] sm:$0xff]
  %v56 = vld [vmem:[%s0 + $0xb0] sm:$0xff]
  %v57 = vld [vmem:[%s0 + $0xb8] sm:$0xff]
  %v58 = vld [vmem:[%s0 + $0xc0] sm:$0xff]
  %v59 = vld [vmem:[%s0 + $0xc8] sm:$0xff]
  %v60 = vld [vmem:[%s0 + $0xd0] sm:$0xff]
  %v61 = vld [vmem:[%s0 + $0xd8] sm:$0xff]
  %v62 = vld [vmem:[%s0 + $0xe0] sm:$0xff]
  %v63 = vld [vmem:[%s0 + $0xe8] sm:$0xff]
  %v64 = vld [vmem:[%s0 + $0xf0] sm:$0xff]
  %v65 = vld [vmem:[%s0 + $0xf8] sm:$0xff]
  %v66 = vld [vmem:[%s0 + $0x100] sm:$0xff]
  %v67 = vld [vmem:[%s0 + $0x108] sm:$0xff]
  %v68 = vld [vmem:[%s0 + $0x110] sm:$0xff]
  %v69 = vld [vmem:[%s0 + $0x118] sm:$0xff]
  %v70 = vld [vmem:[%s0 + $0x120] sm:$0xff]
  %v71 = vld [vmem:[%s0 + $0x128] sm:$0xff]
  %v72 = vld [vmem:[%s0 + $0x130] sm:$0xff]
  %v73 = vld [vmem:[%s0 + $0x138] sm:$0xff]
  %v74 = vld [vmem:[%s0 + $0x140] sm:$0xff]
  %v75 = vld [vmem:[%s0 + $0x148] sm:$0xff]
  %v76 = vld [vmem:[%s0 + $0x150] sm:$0xff]
  %v77 = vld [vmem:[%s0 + $0x158] sm:$0xff]
  %v78 = vld [vmem:[%s0 + $0x160] sm:$0xff]
  %v79 = vld [vmem:[%s0 + $0x168] sm:$0xff]
  %v80 = vld [vmem:[%s0 + $0x170] sm:$0xff]
  %v81 = vld [vmem:[%s0 + $0x178] sm:$0xff]
  %v82 = vld [vmem:[%s0 + $0x180] sm:$0xff]
  %v83 = vld [vmem:[%s0 + $0x188] sm:$0xff]
  %v84 = vld [vmem:[%s0 + $0x190] sm:$0xff]
  %v85 = vld [vmem:[%s0 + $0x198] sm:$0xff]
  %v86 = vld [vmem:[%s0 + $0x1a0] sm:$0xff]
  %v87 = vld [vmem:[%s0 + $0x1a8] sm:$0xff]
  %v88 = vld [vmem:[%s0 + $0x1b0] sm:$0xff]
  %v89 = vld [vmem:[%s0 + $0x1b8] sm:$0xff]
  %v90 = vld [vmem:[%s0 + $0x1c0] sm:$0xff]
  %v91 = vld [vmem:[%s0 + $0x1c8] sm:$0xff]
  %v92 = vld [vmem:[%s0 + $0x1d0] sm:$0xff]
  %v93 = vld [vmem:[%s0 + $0x1d8] sm:$0xff]
  %v94 = vld [vmem:[%s0 + $0x1e0] sm:$0xff]
  %v95 = vld [vmem:[%s0 + $0x1e8] sm:$0xff]
  %v96 = vld [vmem:[%s0 + $0x1f0] sm:$0xff]
  %v97 = vld [vmem:[%s0 + $0x1f8] sm:$0xff]
  %v99 = vlaneseq
  %v100 = vshrl.u32 %v99, 7
  %v101 = vsub.s32 0, %v100
  %v102 = vrot.slane %v30, %v101
  %v104 = vmul.f32 %v34, %v102
  %v105 = vmul.f32 %v35, %v102
  %v106 = vmul.f32 %v36, %v102
  %v107 = vmul.f32 %v37, %v102
  %v108 = vmul.f32 %v38, %v102
  %v109 = vmul.f32 %v39, %v102
  %v110 = vmul.f32 %v40, %v102
  %v111 = vmul.f32 %v41, %v102
  %v112 = vmul.f32 %v42, %v102
  %v113 = vmul.f32 %v43, %v102
  %v114 = vmul.f32 %v44, %v102
  %v115 = vmul.f32 %v45, %v102
  %v116 = vmul.f32 %v46, %v102
  %v117 = vmul.f32 %v47, %v102
  %v118 = vmul.f32 %v48, %v102
  %v119 = vmul.f32 %v49, %v102
  %v120 = vmul.f32 %v50, %v102
  %v121 = vmul.f32 %v51, %v102
  %v122 = vmul.f32 %v52, %v102
  %v123 = vmul.f32 %v53, %v102
  %v124 = vmul.f32 %v54, %v102
  %v125 = vmul.f32 %v55, %v102
  %v126 = vmul.f32 %v56, %v102
  %v127 = vmul.f32 %v57, %v102
  %v128 = vmul.f32 %v58, %v102
  %v129 = vmul.f32 %v59, %v102
  %v130 = vmul.f32 %v60, %v102
  %v131 = vmul.f32 %v61, %v102
  %v132 = vmul.f32 %v62, %v102
  %v133 = vmul.f32 %v63, %v102
  %v134 = vmul.f32 %v64, %v102
  %v135 = vmul.f32 %v65, %v102
  %v136 = vmul.f32 %v66, %v102
  %v137 = vmul.f32 %v67, %v102
  %v138 = vmul.f32 %v68, %v102
  %v139 = vmul.f32 %v69, %v102
  %v140 = vmul.f32 %v70, %v102
  %v141 = vmul.f32 %v71, %v102
  %v142 = vmul.f32 %v72, %v102
  %v143 = vmul.f32 %v73, %v102
  %v144 = vmul.f32 %v74, %v102
  %v145 = vmul.f32 %v75, %v102
  %v146 = vmul.f32 %v76, %v102
  %v147 = vmul.f32 %v77, %v102
  %v148 = vmul.f32 %v78, %v102
  %v149 = vmul.f32 %v79, %v102
  %v150 = vmul.f32 %v80, %v102
  %v151 = vmul.f32 %v81, %v102
  %v152 = vmul.f32 %v82, %v102
  %v153 = vmul.f32 %v83, %v102
  %v154 = vmul.f32 %v84, %v102
  %v155 = vmul.f32 %v85, %v102
  %v156 = vmul.f32 %v86, %v102
  %v157 = vmul.f32 %v87, %v102
  %v158 = vmul.f32 %v88, %v102
  %v159 = vmul.f32 %v89, %v102
  %v160 = vmul.f32 %v90, %v102
  %v161 = vmul.f32 %v91, %v102
  %v162 = vmul.f32 %v92, %v102
  %v163 = vmul.f32 %v93, %v102
  %v164 = vmul.f32 %v94, %v102
  %v165 = vmul.f32 %v95, %v102
  %v166 = vmul.f32 %v96, %v102
  %v167 = vmul.f32 %v97, %v102
  %v169 = vlaneseq
  %v170 = vshrl.u32 %v169, 7
  %v171 = vsub.s32 0, %v170
  %v172 = vrot.slane %v33, %v171
  %v174 = vadd.f32 %v104, %v172
  %v175 = vadd.f32 %v105, %v172
  %v176 = vadd.f32 %v106, %v172
  %v177 = vadd.f32 %v107, %v172
  %v178 = vadd.f32 %v108, %v172
  %v179 = vadd.f32 %v109, %v172
  %v180 = vadd.f32 %v110, %v172
  %v181 = vadd.f32 %v111, %v172
  %v182 = vadd.f32 %v112, %v172
  %v183 = vadd.f32 %v113, %v172
  %v184 = vadd.f32 %v114, %v172
  %v185 = vadd.f32 %v115, %v172
  %v186 = vadd.f32 %v116, %v172
  %v187 = vadd.f32 %v117, %v172
  %v188 = vadd.f32 %v118, %v172
  %v189 = vadd.f32 %v119, %v172
  %v190 = vadd.f32 %v120, %v172
  %v191 = vadd.f32 %v121, %v172
  %v192 = vadd.f32 %v122, %v172
  %v193 = vadd.f32 %v123, %v172
  %v194 = vadd.f32 %v124, %v172
  %v195 = vadd.f32 %v125, %v172
  %v196 = vadd.f32 %v126, %v172
  %v197 = vadd.f32 %v127, %v172
  %v198 = vadd.f32 %v128, %v172
  %v199 = vadd.f32 %v129, %v172
  %v200 = vadd.f32 %v130, %v172
  %v201 = vadd.f32 %v131, %v172
  %v202 = vadd.f32 %v132, %v172
  %v203 = vadd.f32 %v133, %v172
  %v204 = vadd.f32 %v134, %v172
  %v205 = vadd.f32 %v135, %v172
  %v206 = vadd.f32 %v136, %v172
  %v207 = vadd.f32 %v137, %v172
  %v208 = vadd.f32 %v138, %v172
  %v209 = vadd.f32 %v139, %v172
  %v210 = vadd.f32 %v140, %v172
  %v211 = vadd.f32 %v141, %v172
  %v212 = vadd.f32 %v142, %v172
  %v213 = vadd.f32 %v143, %v172
  %v214 = vadd.f32 %v144, %v172
  %v215 = vadd.f32 %v145, %v172
  %v216 = vadd.f32 %v146, %v172
  %v217 = vadd.f32 %v147, %v172
  %v218 = vadd.f32 %v148, %v172
  %v219 = vadd.f32 %v149, %v172
  %v220 = vadd.f32 %v150, %v172
  %v221 = vadd.f32 %v151, %v172
  %v222 = vadd.f32 %v152, %v172
  %v223 = vadd.f32 %v153, %v172
  %v224 = vadd.f32 %v154, %v172
  %v225 = vadd.f32 %v155, %v172
  %v226 = vadd.f32 %v156, %v172
  %v227 = vadd.f32 %v157, %v172
  %v228 = vadd.f32 %v158, %v172
  %v229 = vadd.f32 %v159, %v172
  %v230 = vadd.f32 %v160, %v172
  %v231 = vadd.f32 %v161, %v172
  %v232 = vadd.f32 %v162, %v172
  %v233 = vadd.f32 %v163, %v172
  %v234 = vadd.f32 %v164, %v172
  %v235 = vadd.f32 %v165, %v172
  %v236 = vadd.f32 %v166, %v172
  %v237 = vadd.f32 %v167, %v172
  %v238 = vmax.f32 %v174, 0.0
  %v239 = vmax.f32 %v175, 0.0
  %v240 = vmax.f32 %v176, 0.0
  %v241 = vmax.f32 %v177, 0.0
  %v242 = vmax.f32 %v178, 0.0
  %v243 = vmax.f32 %v179, 0.0
  %v244 = vmax.f32 %v180, 0.0
  %v245 = vmax.f32 %v181, 0.0
  %v246 = vmax.f32 %v182, 0.0
  %v247 = vmax.f32 %v183, 0.0
  %v248 = vmax.f32 %v184, 0.0
  %v249 = vmax.f32 %v185, 0.0
  %v250 = vmax.f32 %v186, 0.0
  %v251 = vmax.f32 %v187, 0.0
  %v252 = vmax.f32 %v188, 0.0
  %v253 = vmax.f32 %v189, 0.0
  %v254 = vmax.f32 %v190, 0.0
  %v255 = vmax.f32 %v191, 0.0
  %v256 = vmax.f32 %v192, 0.0
  %v257 = vmax.f32 %v193, 0.0
  %v258 = vmax.f32 %v194, 0.0
  %v259 = vmax.f32 %v195, 0.0
  %v260 = vmax.f32 %v196, 0.0
  %v261 = vmax.f32 %v197, 0.0
  %v262 = vmax.f32 %v198, 0.0
  %v263 = vmax.f32 %v199, 0.0
  %v264 = vmax.f32 %v200, 0.0
  %v265 = vmax.f32 %v201, 0.0
  %v266 = vmax.f32 %v202, 0.0
  %v267 = vmax.f32 %v203, 0.0
  %v268 = vmax.f32 %v204, 0.0
  %v269 = vmax.f32 %v205, 0.0
  %v270 = vmax.f32 %v206, 0.0
  %v271 = vmax.f32 %v207, 0.0
  %v272 = vmax.f32 %v208, 0.0
  %v273 = vmax.f32 %v209, 0.0
  %v274 = vmax.f32 %v210, 0.0
  %v275 = vmax.f32 %v211, 0.0
  %v276 = vmax.f32 %v212, 0.0
  %v277 = vmax.f32 %v213, 0.0
  %v278 = vmax.f32 %v214, 0.0
  %v279 = vmax.f32 %v215, 0.0
  %v280 = vmax.f32 %v216, 0.0
  %v281 = vmax.f32 %v217, 0.0
  %v282 = vmax.f32 %v218, 0.0
  %v283 = vmax.f32 %v219, 0.0
  %v284 = vmax.f32 %v220, 0.0
  %v285 = vmax.f32 %v221, 0.0
  %v286 = vmax.f32 %v222, 0.0
  %v287 = vmax.f32 %v223, 0.0
  %v288 = vmax.f32 %v224, 0.0
  %v289 = vmax.f32 %v225, 0.0
  %v290 = vmax.f32 %v226, 0.0
  %v291 = vmax.f32 %v227, 0.0
  %v292 = vmax.f32 %v228, 0.0
  %v293 = vmax.f32 %v229, 0.0
  %v294 = vmax.f32 %v230, 0.0
  %v295 = vmax.f32 %v231, 0.0
  %v296 = vmax.f32 %v232, 0.0
  %v297 = vmax.f32 %v233, 0.0
  %v298 = vmax.f32 %v234, 0.0
  %v299 = vmax.f32 %v235, 0.0
  %v300 = vmax.f32 %v236, 0.0
  %v301 = vmax.f32 %v237, 0.0
  %v302 = vpack.c.bf16 %v239, %v238
  %v303 = vpack.c.bf16 %v241, %v240
  %v304 = vpack.c.bf16 %v243, %v242
  %v305 = vpack.c.bf16 %v245, %v244
  %v306 = vpack.c.bf16 %v247, %v246
  %v307 = vpack.c.bf16 %v249, %v248
  %v308 = vpack.c.bf16 %v251, %v250
  %v309 = vpack.c.bf16 %v253, %v252
  %v310 = vpack.c.bf16 %v255, %v254
  %v311 = vpack.c.bf16 %v257, %v256
  %v312 = vpack.c.bf16 %v259, %v258
  %v313 = vpack.c.bf16 %v261, %v260
  %v314 = vpack.c.bf16 %v263, %v262
  %v315 = vpack.c.bf16 %v265, %v264
  %v316 = vpack.c.bf16 %v267, %v266
  %v317 = vpack.c.bf16 %v269, %v268
  %v318 = vpack.c.bf16 %v271, %v270
  %v319 = vpack.c.bf16 %v273, %v272
  %v320 = vpack.c.bf16 %v275, %v274
  %v321 = vpack.c.bf16 %v277, %v276
  %v322 = vpack.c.bf16 %v279, %v278
  %v323 = vpack.c.bf16 %v281, %v280
  %v324 = vpack.c.bf16 %v283, %v282
  %v325 = vpack.c.bf16 %v285, %v284
  %v326 = vpack.c.bf16 %v287, %v286
  %v327 = vpack.c.bf16 %v289, %v288
  %v328 = vpack.c.bf16 %v291, %v290
  %v329 = vpack.c.bf16 %v293, %v292
  %v330 = vpack.c.bf16 %v295, %v294
  %v331 = vpack.c.bf16 %v297, %v296
  %v332 = vpack.c.bf16 %v299, %v298
  %v333 = vpack.c.bf16 %v301, %v300
  %v366 = vunpack.c.l.b16 %v302
  %v367 = vunpack.c.h.b16 %v302
  %v368 = vunpack.c.l.b16 %v303
  %v369 = vunpack.c.h.b16 %v303
  %v370 = vunpack.c.l.b16 %v304
  %v371 = vunpack.c.h.b16 %v304
  %v372 = vunpack.c.l.b16 %v305
  %v373 = vunpack.c.h.b16 %v305
  %v374 = vunpack.c.l.b16 %v306
  %v375 = vunpack.c.h.b16 %v306
  %v376 = vunpack.c.l.b16 %v307
  %v377 = vunpack.c.h.b16 %v307
  %v378 = vunpack.c.l.b16 %v308
  %v379 = vunpack.c.h.b16 %v308
  %v380 = vunpack.c.l.b16 %v309
  %v381 = vunpack.c.h.b16 %v309
  %v382 = vunpack.c.l.b16 %v310
  %v383 = vunpack.c.h.b16 %v310
  %v384 = vunpack.c.l.b16 %v311
  %v385 = vunpack.c.h.b16 %v311
  %v386 = vunpack.c.l.b16 %v312
  %v387 = vunpack.c.h.b16 %v312
  %v388 = vunpack.c.l.b16 %v313
  %v389 = vunpack.c.h.b16 %v313
  %v390 = vunpack.c.l.b16 %v314
  %v391 = vunpack.c.h.b16 %v314
  %v392 = vunpack.c.l.b16 %v315
  %v393 = vunpack.c.h.b16 %v315
  %v394 = vunpack.c.l.b16 %v316
  %v395 = vunpack.c.h.b16 %v316
  %v396 = vunpack.c.l.b16 %v317
  %v397 = vunpack.c.h.b16 %v317
  %v398 = vunpack.c.l.b16 %v318
  %v399 = vunpack.c.h.b16 %v318
  %v400 = vunpack.c.l.b16 %v319
  %v401 = vunpack.c.h.b16 %v319
  %v402 = vunpack.c.l.b16 %v320
  %v403 = vunpack.c.h.b16 %v320
  %v404 = vunpack.c.l.b16 %v321
  %v405 = vunpack.c.h.b16 %v321
  %v406 = vunpack.c.l.b16 %v322
  %v407 = vunpack.c.h.b16 %v322
  %v408 = vunpack.c.l.b16 %v323
  %v409 = vunpack.c.h.b16 %v323
  %v410 = vunpack.c.l.b16 %v324
  %v411 = vunpack.c.h.b16 %v324
  %v412 = vunpack.c.l.b16 %v325
  %v413 = vunpack.c.h.b16 %v325
  %v414 = vunpack.c.l.b16 %v326
  %v415 = vunpack.c.h.b16 %v326
  %v416 = vunpack.c.l.b16 %v327
  %v417 = vunpack.c.h.b16 %v327
  %v418 = vunpack.c.l.b16 %v328
  %v419 = vunpack.c.h.b16 %v328
  %v420 = vunpack.c.l.b16 %v329
  %v421 = vunpack.c.h.b16 %v329
  %v422 = vunpack.c.l.b16 %v330
  %v423 = vunpack.c.h.b16 %v330
  %v424 = vunpack.c.l.b16 %v331
  %v425 = vunpack.c.h.b16 %v331
  %v426 = vunpack.c.l.b16 %v332
  %v427 = vunpack.c.h.b16 %v332
  %v428 = vunpack.c.l.b16 %v333
  %v429 = vunpack.c.h.b16 %v333
  %v430 = vpack.c.b16 %v366, %v366
  %v431 = vpack.c.b16 %v367, %v367
  %v432 = vpack.c.b16 %v368, %v368
  %v433 = vpack.c.b16 %v369, %v369
  %v434 = vpack.c.b16 %v370, %v370
  %v435 = vpack.c.b16 %v371, %v371
  %v436 = vpack.c.b16 %v372, %v372
  %v437 = vpack.c.b16 %v373, %v373
  %v438 = vpack.c.b16 %v374, %v374
  %v439 = vpack.c.b16 %v375, %v375
  %v440 = vpack.c.b16 %v376, %v376
  %v441 = vpack.c.b16 %v377, %v377
  %v442 = vpack.c.b16 %v378, %v378
  %v443 = vpack.c.b16 %v379, %v379
  %v444 = vpack.c.b16 %v380, %v380
  %v445 = vpack.c.b16 %v381, %v381
  %v446 = vpack.c.b16 %v382, %v382
  %v447 = vpack.c.b16 %v383, %v383
  %v448 = vpack.c.b16 %v384, %v384
  %v449 = vpack.c.b16 %v385, %v385
  %v450 = vpack.c.b16 %v386, %v386
  %v451 = vpack.c.b16 %v387, %v387
  %v452 = vpack.c.b16 %v388, %v388
  %v453 = vpack.c.b16 %v389, %v389
  %v454 = vpack.c.b16 %v390, %v390
  %v455 = vpack.c.b16 %v391, %v391
  %v456 = vpack.c.b16 %v392, %v392
  %v457 = vpack.c.b16 %v393, %v393
  %v458 = vpack.c.b16 %v394, %v394
  %v459 = vpack.c.b16 %v395, %v395
  %v460 = vpack.c.b16 %v396, %v396
  %v461 = vpack.c.b16 %v397, %v397
  %v462 = vpack.c.b16 %v398, %v398
  %v463 = vpack.c.b16 %v399, %v399
  %v464 = vpack.c.b16 %v400, %v400
  %v465 = vpack.c.b16 %v401, %v401
  %v466 = vpack.c.b16 %v402, %v402
  %v467 = vpack.c.b16 %v403, %v403
  %v468 = vpack.c.b16 %v404, %v404
  %v469 = vpack.c.b16 %v405, %v405
  %v470 = vpack.c.b16 %v406, %v406
  %v471 = vpack.c.b16 %v407, %v407
  %v472 = vpack.c.b16 %v408, %v408
  %v473 = vpack.c.b16 %v409, %v409
  %v474 = vpack.c.b16 %v410, %v410
  %v475 = vpack.c.b16 %v411, %v411
  %v476 = vpack.c.b16 %v412, %v412
  %v477 = vpack.c.b16 %v413, %v413
  %v478 = vpack.c.b16 %v414, %v414
  %v479 = vpack.c.b16 %v415, %v415
  %v480 = vpack.c.b16 %v416, %v416
  %v481 = vpack.c.b16 %v417, %v417
  %v482 = vpack.c.b16 %v418, %v418
  %v483 = vpack.c.b16 %v419, %v419
  %v484 = vpack.c.b16 %v420, %v420
  %v485 = vpack.c.b16 %v421, %v421
  %v486 = vpack.c.b16 %v422, %v422
  %v487 = vpack.c.b16 %v423, %v423
  %v488 = vpack.c.b16 %v424, %v424
  %v489 = vpack.c.b16 %v425, %v425
  %v490 = vpack.c.b16 %v426, %v426
  %v491 = vpack.c.b16 %v427, %v427
  %v492 = vpack.c.b16 %v428, %v428
  %v493 = vpack.c.b16 %v429, %v429
  %558 = vst [vmem:[%s5] sm:$0xf] %v430
  %559 = vst [vmem:[%s5 + $0x4] sm:$0xf] %v431
  %560 = vst [vmem:[%s5 + $0x8] sm:$0xf] %v432
  %561 = vst [vmem:[%s5 + $0xc] sm:$0xf] %v433
  %562 = vst [vmem:[%s5 + $0x10] sm:$0xf] %v434
  %563 = vst [vmem:[%s5 + $0x14] sm:$0xf] %v435
  %564 = vst [vmem:[%s5 + $0x18] sm:$0xf] %v436
  %565 = vst [vmem:[%s5 + $0x1c] sm:$0xf] %v437
  %566 = vst [vmem:[%s5 + $0x20] sm:$0xf] %v438
  %567 = vst [vmem:[%s5 + $0x24] sm:$0xf] %v439
  %568 = vst [vmem:[%s5 + $0x28] sm:$0xf] %v440
  %569 = vst [vmem:[%s5 + $0x2c] sm:$0xf] %v441
  %570 = vst [vmem:[%s5 + $0x30] sm:$0xf] %v442
  %571 = vst [vmem:[%s5 + $0x34] sm:$0xf] %v443
  %572 = vst [vmem:[%s5 + $0x38] sm:$0xf] %v444
  %573 = vst [vmem:[%s5 + $0x3c] sm:$0xf] %v445
  %574 = vst [vmem:[%s5 + $0x40] sm:$0xf] %v446
  %575 = vst [vmem:[%s5 + $0x44] sm:$0xf] %v447
  %576 = vst [vmem:[%s5 + $0x48] sm:$0xf] %v448
  %577 = vst [vmem:[%s5 + $0x4c] sm:$0xf] %v449
  %578 = vst [vmem:[%s5 + $0x50] sm:$0xf] %v450
  %579 = vst [vmem:[%s5 + $0x54] sm:$0xf] %v451
  %580 = vst [vmem:[%s5 + $0x58] sm:$0xf] %v452
  %581 = vst [vmem:[%s5 + $0x5c] sm:$0xf] %v453
  %582 = vst [vmem:[%s5 + $0x60] sm:$0xf] %v454
  %583 = vst [vmem:[%s5 + $0x64] sm:$0xf] %v455
  %584 = vst [vmem:[%s5 + $0x68] sm:$0xf] %v456
  %585 = vst [vmem:[%s5 + $0x6c] sm:$0xf] %v457
  %586 = vst [vmem:[%s5 + $0x70] sm:$0xf] %v458
  %587 = vst [vmem:[%s5 + $0x74] sm:$0xf] %v459
  %588 = vst [vmem:[%s5 + $0x78] sm:$0xf] %v460
  %589 = vst [vmem:[%s5 + $0x7c] sm:$0xf] %v461
  %590 = vst [vmem:[%s5 + $0x80] sm:$0xf] %v462
  %591 = vst [vmem:[%s5 + $0x84] sm:$0xf] %v463
  %592 = vst [vmem:[%s5 + $0x88] sm:$0xf] %v464
  %593 = vst [vmem:[%s5 + $0x8c] sm:$0xf] %v465
  %594 = vst [vmem:[%s5 + $0x90] sm:$0xf] %v466
  %595 = vst [vmem:[%s5 + $0x94] sm:$0xf] %v467
  %596 = vst [vmem:[%s5 + $0x98] sm:$0xf] %v468
  %597 = vst [vmem:[%s5 + $0x9c] sm:$0xf] %v469
  %598 = vst [vmem:[%s5 + $0xa0] sm:$0xf] %v470
  %599 = vst [vmem:[%s5 + $0xa4] sm:$0xf] %v471
  %600 = vst [vmem:[%s5 + $0xa8] sm:$0xf] %v472
  %601 = vst [vmem:[%s5 + $0xac] sm:$0xf] %v473
  %602 = vst [vmem:[%s5 + $0xb0] sm:$0xf] %v474
  %603 = vst [vmem:[%s5 + $0xb4] sm:$0xf] %v475
  %604 = vst [vmem:[%s5 + $0xb8] sm:$0xf] %v476
  %605 = vst [vmem:[%s5 + $0xbc] sm:$0xf] %v477
  %606 = vst [vmem:[%s5 + $0xc0] sm:$0xf] %v478
  %607 = vst [vmem:[%s5 + $0xc4] sm:$0xf] %v479
  %608 = vst [vmem:[%s5 + $0xc8] sm:$0xf] %v480
  %609 = vst [vmem:[%s5 + $0xcc] sm:$0xf] %v481
  %610 = vst [vmem:[%s5 + $0xd0] sm:$0xf] %v482
  %611 = vst [vmem:[%s5 + $0xd4] sm:$0xf] %v483
  %612 = vst [vmem:[%s5 + $0xd8] sm:$0xf] %v484
  %613 = vst [vmem:[%s5 + $0xdc] sm:$0xf] %v485
  %614 = vst [vmem:[%s5 + $0xe0] sm:$0xf] %v486
  %615 = vst [vmem:[%s5 + $0xe4] sm:$0xf] %v487
  %616 = vst [vmem:[%s5 + $0xe8] sm:$0xf] %v488
  %617 = vst [vmem:[%s5 + $0xec] sm:$0xf] %v489
  %618 = vst [vmem:[%s5 + $0xf0] sm:$0xf] %v490
  %619 = vst [vmem:[%s5 + $0xf4] sm:$0xf] %v491
  %620 = vst [vmem:[%s5 + $0xf8] sm:$0xf] %v492
  %621 = vst [vmem:[%s5 + $0xfc] sm:$0xf] %v493
  // Predicated region
  $region22: #{dual_conv_bn_relu_forward.5} parent=0 // pred_check
    _
  $region23: #{dual_conv_bn_relu_forward.5} parent=0 // pred_check_branch
    %623 = sbr.rel (0) target = $region25
  $region24: #{dual_conv_bn_relu_forward.5} parent=0 // pred_region
    _
  $region25: #{dual_conv_bn_relu_forward.5} parent=0 // pred_fallthru
    _
  // Predicated region
  $region26: #{dual_conv_bn_relu_forward.5} parent=0 // pred_check
    _
  $region27: #{dual_conv_bn_relu_forward.5} parent=0 // pred_check_branch
    %625 = sbr.rel (0) target = $region29
  $region28: #{dual_conv_bn_relu_forward.5} parent=0 // pred_region
    _
  $region29: #{dual_conv_bn_relu_forward.5} parent=0 // pred_fallthru
    _

// kernel: dual_conv_bn_relu_forward.4
$region0: #{dual_conv_bn_relu_forward.4}
  #allocation0 [shape = 'u32[]', space=smem, size = 0x4, offset = 0x4, fixed_abs, tag = 'smem constant byte address 0x4 - core index']
  #allocation1 [shape = 'u32[144,128]{1,0:T(1,128)}', space=vmem, size = 0x12000, scoped, tag = 'internal scratch']
  %s0 = inlined_call_operand.vmem [shape: bf16[2,18,18,128], index: 0, kind: input, shape index: {}, may-alias: {0,1,2}]
  %s1 = inlined_call_operand.vmem [shape: bf16[2,18,18,128], index: 1, kind: input, shape index: {}, may-alias: {0,1,2}]
  %s2 = inlined_call_operand.vmem [shape: bf16[2,18,18,128], index: 2, kind: input, shape index: {}, may-alias: {0,1,2}]
  %s3 = inlined_call_operand.vmem [shape: bf16[9,128,128], index: 3, kind: input, shape index: {}]
  %s4 = inlined_call_operand.vmem [shape: f32[2,16,16,128], index: 4, kind: output, shape index: {0}]
  %s5 = inlined_call_operand.vmem [shape: f32[1,128], index: 5, kind: output, shape index: {1}]
  %s6 = inlined_call_operand.vmem [shape: f32[1,128], index: 6, kind: output, shape index: {2}]
  %7 = xla_tuple %s4, %s5, %s6
  %s8 = sld [smem:[#allocation0]]
  $region73: #{dual_conv_bn_relu_forward.4} parent=0
    _
  %s10 = ssub.s32 1, %s8
  %s11 = scalar_select 0, %s10, %s8
  loop: start=0, step=1, limit=34
  $region2: #{dual_conv_bn_relu_forward.4} parent=0 // loop_pre_header
    _
  $region3: #{dual_conv_bn_relu_forward.4} parent=0 // loop_header
    %s13 = sphi 0, %s17
    %p14 = scmp.ge.s32.totalorder %s13, 34
    %s20 = sphi 0, %s32
    %s21 = sphi 0, %s28
    %s22 = sphi 0, %s20
    %s23 = sphi 0, %s21
    %s24 = sphi 0, %s22
    %s25 = sphi 0, %s23
    %s37 = sphi 0, %s39
    %s40 = sphi 0, %s37
    %s41 = sphi 0, %s40
    %s57 = sphi 0, %s41
    %s67 = sphi 0, %s69
    %s70 = sphi 0, %s67
    %s71 = sphi 0, %s70
    %s87 = sphi 0, %s71
    %s97 = sphi 0, %s99
    %s100 = sphi 0, %s97
    %s101 = sphi 0, %s100
    %s117 = sphi 0, %s101
    %s121 = sphi 0, %s121
    %s123 = sphi 0, %s121
    %s124 = sphi 0, %s123
    %s138 = sphi 0, %s124
    %s146 = sphi 0, %s148
    %s149 = sphi 0, %s146
    %s150 = sphi 0, %s149
    %s166 = sphi 0, %s150
    %s170 = sphi 0, %s170
    %s172 = sphi 0, %s170
    %s173 = sphi 0, %s172
    %s187 = sphi 0, %s173
    %s191 = sphi 0, %s191
    %s193 = sphi 0, %s191
    %s194 = sphi 0, %s193
    %s208 = sphi 0, %s194
  $region4: #{dual_conv_bn_relu_forward.4} parent=0 // loop_header_branch
    %16 = sbr.rel (%p14) target = $region8
  $region5: #{dual_conv_bn_relu_forward.4} parent=0 // loop_body
    %s18 = ssub.s32 %s13, 1
    %s19 = ssub.s32 %s13, 2
    %s26 = sadd.s32 1, %s21
    %p27 = scmp.ge.s32.totalorder %s26, 16
    %s28 = scalar_select %p27, 0, %s26
    %s29 = sadd.s32 1, %s20
    %s30 = scalar_select %p27, %s29, %s20
    %p31 = scmp.ge.s32.totalorder %s30, 2
    %s32 = scalar_select %p31, 0, %s30
    %s33 = ssub.s32 %s20, %s32
    %s34 = ssub.s32 %s21, %s28
    %s35 = sor.u32 %s33, %s34
    %p36 = scmp.eq.s32.totalorder %s35, 0
    %s38 = sadd.s32 %s37, 1
    %s39 = scalar_select %p36, %s37, %s38
    %p42 = pneg %p36
    %p43 = scmp.eq.s32.totalorder %s13, 31
    %p44 = por %p42, %p43
    %p45 = scmp.ne.s32.totalorder %s37, %s40
    %p46 = scmp.eq.s32.totalorder %s13, 0
    %p47 = por %p45, %p46
    %p48 = scmp.ne.s32.totalorder %s37, %s40
    %p49 = scmp.eq.s32.totalorder %s18, 31
    %p50 = por %p48, %p49
    %p51 = scmp.ne.s32.totalorder %s40, %s41
    %p52 = scmp.eq.s32.totalorder %s18, 0
    %p53 = por %p51, %p52
    %p54 = scmp.ne.s32.totalorder %s40, %s41
    %p55 = scmp.eq.s32.totalorder %s19, 31
    %p56 = por %p54, %p55
    %p58 = scmp.ne.s32.totalorder %s41, %s57
    %p59 = scmp.eq.s32.totalorder %s19, 0
    %p60 = por %p58, %p59
    %s61 = sadd.s32 %s21, 1
    %s62 = sadd.s32 %s28, 1
    %s63 = ssub.s32 %s20, %s32
    %s64 = ssub.s32 %s61, %s62
    %s65 = sor.u32 %s63, %s64
    %p66 = scmp.eq.s32.totalorder %s65, 0
    %s68 = sadd.s32 %s67, 1
    %s69 = scalar_select %p66, %s67, %s68
    %p72 = pneg %p66
    %p73 = scmp.eq.s32.totalorder %s13, 31
    %p74 = por %p72, %p73
    %p75 = scmp.ne.s32.totalorder %s67, %s70
    %p76 = scmp.eq.s32.totalorder %s13, 0
    %p77 = por %p75, %p76
    %p78 = scmp.ne.s32.totalorder %s67, %s70
    %p79 = scmp.eq.s32.totalorder %s18, 31
    %p80 = por %p78, %p79
    %p81 = scmp.ne.s32.totalorder %s70, %s71
    %p82 = scmp.eq.s32.totalorder %s18, 0
    %p83 = por %p81, %p82
    %p84 = scmp.ne.s32.totalorder %s70, %s71
    %p85 = scmp.eq.s32.totalorder %s19, 31
    %p86 = por %p84, %p85
    %p88 = scmp.ne.s32.totalorder %s71, %s87
    %p89 = scmp.eq.s32.totalorder %s19, 0
    %p90 = por %p88, %p89
    %s91 = sadd.s32 %s21, 2
    %s92 = sadd.s32 %s28, 2
    %s93 = ssub.s32 %s20, %s32
    %s94 = ssub.s32 %s91, %s92
    %s95 = sor.u32 %s93, %s94
    %p96 = scmp.eq.s32.totalorder %s95, 0
    %s98 = sadd.s32 %s97, 1
    %s99 = scalar_select %p96, %s97, %s98
    %p102 = pneg %p96
    %p103 = scmp.eq.s32.totalorder %s13, 31
    %p104 = por %p102, %p103
    %p105 = scmp.ne.s32.totalorder %s97, %s100
    %p106 = scmp.eq.s32.totalorder %s13, 0
    %p107 = por %p105, %p106
    %p108 = scmp.ne.s32.totalorder %s97, %s100
    %p109 = scmp.eq.s32.totalorder %s18, 31
    %p110 = por %p108, %p109
    %p111 = scmp.ne.s32.totalorder %s100, %s101
    %p112 = scmp.eq.s32.totalorder %s18, 0
    %p113 = por %p111, %p112
    %p114 = scmp.ne.s32.totalorder %s100, %s101
    %p115 = scmp.eq.s32.totalorder %s19, 31
    %p116 = por %p114, %p115
    %p118 = scmp.ne.s32.totalorder %s101, %s117
    %p119 = scmp.eq.s32.totalorder %s19, 0
    %p120 = por %p118, %p119
    %s122 = sadd.s32 %s121, 1
    %p125 = scmp.eq.s32.totalorder %s13, 31
    %p126 = scmp.ne.s32.totalorder %s121, %s123
    %p127 = scmp.eq.s32.totalorder %s13, 0
    %p128 = por %p126, %p127
    %p129 = scmp.ne.s32.totalorder %s121, %s123
    %p130 = scmp.eq.s32.totalorder %s18, 31
    %p131 = por %p129, %p130
    %p132 = scmp.ne.s32.totalorder %s123, %s124
    %p133 = scmp.eq.s32.totalorder %s18, 0
    %p134 = por %p132, %p133
    %p135 = scmp.ne.s32.totalorder %s123, %s124
    %p136 = scmp.eq.s32.totalorder %s19, 31
    %p137 = por %p135, %p136
    %p139 = scmp.ne.s32.totalorder %s124, %s138
    %p140 = scmp.eq.s32.totalorder %s19, 0
    %p141 = por %p139, %p140
    %s142 = ssub.s32 %s20, %s32
    %s143 = ssub.s32 %s21, %s28
    %s144 = sor.u32 %s142, %s143
    %p145 = scmp.eq.s32.totalorder %s144, 0
    %s147 = sadd.s32 %s146, 1
    %s148 = scalar_select %p145, %s146, %s147
    %p151 = pneg %p145
    %p152 = scmp.eq.s32.totalorder %s13, 31
    %p153 = por %p151, %p152
    %p154 = scmp.ne.s32.totalorder %s146, %s149
    %p155 = scmp.eq.s32.totalorder %s13, 0
    %p156 = por %p154, %p155
    %p157 = scmp.ne.s32.totalorder %s146, %s149
    %p158 = scmp.eq.s32.totalorder %s18, 31
    %p159 = por %p157, %p158
    %p160 = scmp.ne.s32.totalorder %s149, %s150
    %p161 = scmp.eq.s32.totalorder %s18, 0
    %p162 = por %p160, %p161
    %p163 = scmp.ne.s32.totalorder %s149, %s150
    %p164 = scmp.eq.s32.totalorder %s19, 31
    %p165 = por %p163, %p164
    %p167 = scmp.ne.s32.totalorder %s150, %s166
    %p168 = scmp.eq.s32.totalorder %s19, 0
    %p169 = por %p167, %p168
    %s171 = sadd.s32 %s170, 1
    %p174 = scmp.eq.s32.totalorder %s13, 31
    %p175 = scmp.ne.s32.totalorder %s170, %s172
    %p176 = scmp.eq.s32.totalorder %s13, 0
    %p177 = por %p175, %p176
    %p178 = scmp.ne.s32.totalorder %s170, %s172
    %p179 = scmp.eq.s32.totalorder %s18, 31
    %p180 = por %p178, %p179
    %p181 = scmp.ne.s32.totalorder %s172, %s173
    %p182 = scmp.eq.s32.totalorder %s18, 0
    %p183 = por %p181, %p182
    %p184 = scmp.ne.s32.totalorder %s172, %s173
    %p185 = scmp.eq.s32.totalorder %s19, 31
    %p186 = por %p184, %p185
    %p188 = scmp.ne.s32.totalorder %s173, %s187
    %p189 = scmp.eq.s32.totalorder %s19, 0
    %p190 = por %p188, %p189
    %s192 = sadd.s32 %s191, 1
    %p195 = scmp.eq.s32.totalorder %s13, 31
    %p196 = scmp.ne.s32.totalorder %s191, %s193
    %p197 = scmp.eq.s32.totalorder %s13, 0
    %p198 = por %p196, %p197
    %p199 = scmp.ne.s32.totalorder %s191, %s193
    %p200 = scmp.eq.s32.totalorder %s18, 31
    %p201 = por %p199, %p200
    %p202 = scmp.ne.s32.totalorder %s193, %s194
    %p203 = scmp.eq.s32.totalorder %s18, 0
    %p204 = por %p202, %p203
    %p205 = scmp.ne.s32.totalorder %s193, %s194
    %p206 = scmp.eq.s32.totalorder %s19, 31
    %p207 = por %p205, %p206
    %p209 = scmp.ne.s32.totalorder %s194, %s208
    %p210 = scmp.eq.s32.totalorder %s19, 0
    %p211 = por %p209, %p210
    %p212 = scmp.le.s32.totalorder 1, %s13
    %p213 = scmp.lt.s32.totalorder %s13, 33
    %p214 = pnand %p212, %p213
    %p215 = pneg %p214
    // Predicated region
    $region9: #{dual_conv_bn_relu_forward.4} parent=5 // pred_check
      _
    $region10: #{dual_conv_bn_relu_forward.4} parent=5 // pred_check_branch
      %217 = sbr.rel (%p214) target = $region12
    $region11: #{dual_conv_bn_relu_forward.4} parent=5 // pred_region
      %s218 = ssub.s32 %s13, 1
      // Predicated region
      $region13: #{dual_conv_bn_relu_forward.4} parent=11 // pred_check
        %p219 = pneg %p134
      $region14: #{dual_conv_bn_relu_forward.4} parent=11 // pred_check_branch
        %221 = sbr.rel (%p219) target = $region16
      $region15: #{dual_conv_bn_relu_forward.4} parent=11 // pred_region
        _
      $region16: #{dual_conv_bn_relu_forward.4} parent=11 // pred_fallthru
        _
    $region12: #{dual_conv_bn_relu_forward.4} parent=5 // pred_fallthru
      _
    %p222 = scmp.lt.s32.totalorder %s13, 32
    // Predicated region
    $region17: #{dual_conv_bn_relu_forward.4} parent=5 // pred_check
      %p223 = pneg %p222
    $region18: #{dual_conv_bn_relu_forward.4} parent=5 // pred_check_branch
      %225 = sbr.rel (%p223) target = $region20
    $region19: #{dual_conv_bn_relu_forward.4} parent=5 // pred_region
      // Predicated region
      $region21: #{dual_conv_bn_relu_forward.4} parent=19 // pred_check
        %p226 = pneg %p47
      $region22: #{dual_conv_bn_relu_forward.4} parent=19 // pred_check_branch
        %228 = sbr.rel (%p226) target = $region24
      $region23: #{dual_conv_bn_relu_forward.4} parent=19 // pred_region
        %p229 = scmp.lt.s32.totalorder %s20, 1
        %s230 = scalar_select %p229, %s20, 1
        %p231 = scmp.lt.s32.totalorder %s21, 17
        %s232 = scalar_select %p231, %s21, 17
        %s233 = smul.addr %s232, 3
        %s234 = smul.addr %s230, 54
        %s235 = sadd.s32 %s233, %s234
        %s236 = smul.addr %s235, 4
        %s237 = scalar_lea.vmem %s0, %s236
      $region24: #{dual_conv_bn_relu_forward.4} parent=19 // pred_fallthru
        _
      // Predicated region
      $region25: #{dual_conv_bn_relu_forward.4} parent=19 // pred_check
        %p238 = pneg %p77
      $region26: #{dual_conv_bn_relu_forward.4} parent=19 // pred_check_branch
        %240 = sbr.rel (%p238) target = $region28
      $region27: #{dual_conv_bn_relu_forward.4} parent=19 // pred_region
        %s241 = sadd.s32 %s21, 1
        %p242 = scmp.lt.s32.totalorder %s20, 1
        %s243 = scalar_select %p242, %s20, 1
        %p244 = scmp.lt.s32.totalorder %s241, 17
        %s245 = scalar_select %p244, %s241, 17
        %s246 = smul.addr %s245, 3
        %s247 = smul.addr %s243, 54
        %s248 = sadd.s32 %s246, %s247
        %s249 = smul.addr %s248, 4
        %s250 = scalar_lea.vmem %s1, %s249
        %s251 = sadd.s32 %s21, 1
      $region28: #{dual_conv_bn_relu_forward.4} parent=19 // pred_fallthru
        _
      // Predicated region
      $region29: #{dual_conv_bn_relu_forward.4} parent=19 // pred_check
        %p252 = pneg %p107
      $region30: #{dual_conv_bn_relu_forward.4} parent=19 // pred_check_branch
        %254 = sbr.rel (%p252) target = $region32
      $region31: #{dual_conv_bn_relu_forward.4} parent=19 // pred_region
        %s255 = sadd.s32 %s21, 2
        %p256 = scmp.lt.s32.totalorder %s20, 1
        %s257 = scalar_select %p256, %s20, 1
        %p258 = scmp.lt.s32.totalorder %s255, 17
        %s259 = scalar_select %p258, %s255, 17
        %s260 = smul.addr %s259, 3
        %s261 = smul.addr %s257, 54
        %s262 = sadd.s32 %s260, %s261
        %s263 = smul.addr %s262, 4
        %s264 = scalar_lea.vmem %s2, %s263
        %s265 = sadd.s32 %s21, 2
      $region32: #{dual_conv_bn_relu_forward.4} parent=19 // pred_fallthru
        _
    $region20: #{dual_conv_bn_relu_forward.4} parent=5 // pred_fallthru
      _
    %p266 = scmp.le.s32.totalorder 1, %s13
    %p267 = scmp.lt.s32.totalorder %s13, 33
    %p268 = pnand %p266, %p267
    %p269 = pneg %p268
    // Predicated region
    $region33: #{dual_conv_bn_relu_forward.4} parent=5 // pred_check
      _
    $region34: #{dual_conv_bn_relu_forward.4} parent=5 // pred_check_branch
      %271 = sbr.rel (%p268) target = $region36
    $region35: #{dual_conv_bn_relu_forward.4} parent=5 // pred_region
      %s272 = ssub.s32 %s13, 1
      %p273 = scmp.lt.s32.totalorder %s22, 1
      %s274 = scalar_select %p273, %s22, 1
      %p275 = scmp.lt.s32.totalorder %s23, 17
      %s276 = scalar_select %p275, %s23, 17
      %s277 = smul.addr %s276, 3
      %s278 = smul.addr %s274, 54
      %s279 = sadd.s32 %s277, %s278
      %s280 = smul.addr %s279, 4
      %s281 = scalar_lea.vmem %s0, %s280
      %p282 = pneg %p53
      %p283 = pneg %p50
      %s284 = sadd.s32 %s23, 1
      %p285 = scmp.lt.s32.totalorder %s22, 1
      %s286 = scalar_select %p285, %s22, 1
      %p287 = scmp.lt.s32.totalorder %s284, 17
      %s288 = scalar_select %p287, %s284, 17
      %s289 = smul.addr %s288, 3
      %s290 = smul.addr %s286, 54
      %s291 = sadd.s32 %s289, %s290
      %s292 = smul.addr %s291, 4
      %s293 = scalar_lea.vmem %s1, %s292
      %p294 = pneg %p83
      %p295 = pneg %p80
      %s296 = sadd.s32 %s23, 2
      %p297 = scmp.lt.s32.totalorder %s22, 1
      %s298 = scalar_select %p297, %s22, 1
      %p299 = scmp.lt.s32.totalorder %s296, 17
      %s300 = scalar_select %p299, %s296, 17
      %s301 = smul.addr %s300, 3
      %s302 = smul.addr %s298, 54
      %s303 = sadd.s32 %s301, %s302
      %s304 = smul.addr %s303, 4
      %s305 = scalar_lea.vmem %s2, %s304
      %p306 = pneg %p113
      %p307 = pneg %p110
      %p308 = pneg %p134
      %p309 = pneg %p131
      %p310 = pneg %p162
      %p311 = pneg %p159
      %p312 = scmp.lt.s32.totalorder %s22, 1
      %s313 = scalar_select %p312, %s22, 1
      %p314 = scmp.lt.s32.totalorder %s23, 15
      %s315 = scalar_select %p314, %s23, 15
      %s316 = smul.addr %s315, 2
      %s317 = smul.addr %s313, 32
      %s318 = sadd.s32 %s316, %s317
      %s319 = smul.addr %s318, 8
      %s320 = scalar_lea.vmem %s4, %s319
      %p321 = pneg %p183
      %p322 = pneg %p180
      %p323 = pneg %p204
      %p324 = pneg %p201
      %p325 = scmp.lt.s32.totalorder %s22, 1
      %s326 = scalar_select %p325, %s22, 1
      %p327 = scmp.lt.s32.totalorder %s23, 17
      %s328 = scalar_select %p327, %s23, 17
      %s329 = smul.addr %s328, 3
      %s330 = smul.addr %s326, 54
      %s331 = sadd.s32 %s329, %s330
      %s332 = smul.addr %s331, 4
      %s333 = scalar_lea.vmem %s0, %s332
      %s334 = sadd.s32 %s23, 1
      %p335 = scmp.lt.s32.totalorder %s22, 1
      %s336 = scalar_select %p335, %s22, 1
      %p337 = scmp.lt.s32.totalorder %s334, 17
      %s338 = scalar_select %p337, %s334, 17
      %s339 = smul.addr %s338, 3
      %s340 = smul.addr %s336, 54
      %s341 = sadd.s32 %s339, %s340
      %s342 = smul.addr %s341, 4
      %s343 = scalar_lea.vmem %s1, %s342
      %s344 = sadd.s32 %s23, 1
      %s345 = sadd.s32 %s23, 2
      %p346 = scmp.lt.s32.totalorder %s22, 1
      %s347 = scalar_select %p346, %s22, 1
      %p348 = scmp.lt.s32.totalorder %s345, 17
      %s349 = scalar_select %p348, %s345, 17
      %s350 = smul.addr %s349, 3
      %s351 = smul.addr %s347, 54
      %s352 = sadd.s32 %s350, %s351
      %s353 = smul.addr %s352, 4
      %s354 = scalar_lea.vmem %s2, %s353
      %s355 = sadd.s32 %s23, 2
      %p356 = scmp.lt.s32.totalorder %s22, 1
      %s357 = scalar_select %p356, %s22, 1
      %p358 = scmp.lt.s32.totalorder %s23, 15
      %s359 = scalar_select %p358, %s23, 15
      %s360 = smul.addr %s359, 2
      %s361 = smul.addr %s357, 32
      %s362 = sadd.s32 %s360, %s361
      %s363 = smul.addr %s362, 8
      %s364 = scalar_lea.vmem %s4, %s363
      %v366 = vld [vmem:[%s333] sm:$0xf]
      %v367 = vld [vmem:[%s333 + $0x4] sm:$0xf]
      %v368 = vld [vmem:[%s333 + $0x8] sm:$0x1]
      %v369 = vld [vmem:[%s3] sm:$0xf]
      %v370 = vld [vmem:[%s3 + $0x4] sm:$0xf]
      %v371 = vld [vmem:[%s3 + $0x8] sm:$0xf]
      %v372 = vld [vmem:[%s3 + $0xc] sm:$0xf]
      %v373 = vld [vmem:[%s3 + $0x10] sm:$0xf]
      %v374 = vld [vmem:[%s3 + $0x14] sm:$0xf]
      %v375 = vld [vmem:[%s3 + $0x18] sm:$0xf]
      %v376 = vld [vmem:[%s3 + $0x1c] sm:$0xf]
      %v377 = vld [vmem:[%s3 + $0x20] sm:$0xf]
      %v378 = vld [vmem:[%s3 + $0x24] sm:$0xf]
      %v379 = vld [vmem:[%s3 + $0x28] sm:$0xf]
      %v380 = vld [vmem:[%s3 + $0x2c] sm:$0xf]
      %v381 = vld [vmem:[%s3 + $0x30] sm:$0xf]
      %v382 = vld [vmem:[%s3 + $0x34] sm:$0xf]
      %v383 = vld [vmem:[%s3 + $0x38] sm:$0xf]
      %v384 = vld [vmem:[%s3 + $0x3c] sm:$0xf]
      %s385 = scalar_lea.vmem %s3, 64
      %v386 = vld [vmem:[%s385] sm:$0xf]
      %v387 = vld [vmem:[%s385 + $0x4] sm:$0xf]
      %v388 = vld [vmem:[%s385 + $0x8] sm:$0xf]
      %v389 = vld [vmem:[%s385 + $0xc] sm:$0xf]
      %v390 = vld [vmem:[%s385 + $0x10] sm:$0xf]
      %v391 = vld [vmem:[%s385 + $0x14] sm:$0xf]
      %v392 = vld [vmem:[%s385 + $0x18] sm:$0xf]
      %v393 = vld [vmem:[%s385 + $0x1c] sm:$0xf]
      %v394 = vld [vmem:[%s385 + $0x20] sm:$0xf]
      %v395 = vld [vmem:[%s385 + $0x24] sm:$0xf]
      %v396 = vld [vmem:[%s385 + $0x28] sm:$0xf]
      %v397 = vld [vmem:[%s385 + $0x2c] sm:$0xf]
      %v398 = vld [vmem:[%s385 + $0x30] sm:$0xf]
      %v399 = vld [vmem:[%s385 + $0x34] sm:$0xf]
      %v400 = vld [vmem:[%s385 + $0x38] sm:$0xf]
      %v401 = vld [vmem:[%s385 + $0x3c] sm:$0xf]
      %v405 = vunpack.c.l.b16 %v366
      %v406 = vunpack.c.l.b16 %v367
      %v407 = vunpack.c.l.b16 %v368
      %v408 = vpack.c.b16 %v406, %v405
      %v409 = vpack.c.b16 %v407, %v407
      %vm410 = vsmask.f32 7424
      %v412 = vshrl.u32 %v408, 16
      %v414 = vshll.u32 %v408, 16
      %v416 = vrot.slane %v414, 1
      %v417 = vor.u32 %v412, %v416
      %v419 = vshll.u32 %v409, 16
      %v421 = vrot.slane %v419, 1
      %v422 = vsel %vm410, %v417, %v421
      %v440 = vunpack.c.l.b16 %v386
      %v441 = vunpack.c.l.b16 %v387
      %v442 = vunpack.c.l.b16 %v388
      %v443 = vunpack.c.l.b16 %v389
      %v444 = vunpack.c.l.b16 %v390
      %v445 = vunpack.c.l.b16 %v391
      %v446 = vunpack.c.l.b16 %v392
      %v447 = vunpack.c.l.b16 %v393
      %v448 = vunpack.c.l.b16 %v394
      %v449 = vunpack.c.l.b16 %v395
      %v450 = vunpack.c.l.b16 %v396
      %v451 = vunpack.c.l.b16 %v397
      %v452 = vunpack.c.l.b16 %v398
      %v453 = vunpack.c.l.b16 %v399
      %v454 = vunpack.c.l.b16 %v400
      %v455 = vunpack.c.l.b16 %v401
      %v456 = vpack.c.b16 %v441, %v440
      %v457 = vpack.c.b16 %v443, %v442
      %v458 = vpack.c.b16 %v445, %v444
      %v459 = vpack.c.b16 %v447, %v446
      %v460 = vpack.c.b16 %v449, %v448
      %v461 = vpack.c.b16 %v451, %v450
      %v462 = vpack.c.b16 %v453, %v452
      %v463 = vpack.c.b16 %v455, %v454
      %472 = vmatprep.subr.bf16.mxu0 0
      %473 = vmatpush1.bf16.msra.mxu0 %v456
      %474 = vmatprep.subr.bf16.mxu0 0
      %475 = vmatpush1.bf16.msra.mxu0 %v457
      %476 = vmatprep.subr.bf16.mxu0 0
      %477 = vmatpush1.bf16.msra.mxu0 %v458
      %478 = vmatprep.subr.bf16.mxu0 0
      %479 = vmatpush1.bf16.msra.mxu0 %v459
      %480 = vmatprep.subr.bf16.mxu0 0
      %481 = vmatpush1.bf16.msra.mxu0 %v460
      %482 = vmatprep.subr.bf16.mxu0 0
      %483 = vmatpush1.bf16.msra.mxu0 %v461
      %484 = vmatprep.subr.bf16.mxu0 0
      %485 = vmatpush1.bf16.msra.mxu0 %v462
      %486 = vmatprep.subr.bf16.mxu0 0
      %487 = vmatpush1.bf16.msra.mxu0 %v463
      %488 = vmatprep.subr.bf16.mxu0 0
      %489 = vmatpush1.bf16.msra.mxu0 0
      %490 = vmatprep.subr.bf16.mxu0 0
      %491 = vmatpush1.bf16.msra.mxu0 0
      %492 = vmatprep.subr.bf16.mxu0 0
      %493 = vmatpush1.bf16.msra.mxu0 0
      %494 = vmatprep.subr.bf16.mxu0 0
      %495 = vmatpush1.bf16.msra.mxu0 0
      %496 = vmatprep.subr.bf16.mxu0 0
      %497 = vmatpush1.bf16.msra.mxu0 0
      %498 = vmatprep.subr.bf16.mxu0 0
      %499 = vmatpush1.bf16.msra.mxu0 0
      %500 = vmatprep.subr.bf16.mxu0 0
      %501 = vmatpush1.bf16.msra.mxu0 0
      %502 = vmatprep.subr.bf16.mxu0 0
      %503 = vmatpush1.bf16.msra.mxu0 0
      %504 = vmatprep.mubr.bf16.mxu0 0
      %505 = vmatmul.mubr.bf16.gmra.mrb[0].mxu0 %v422
      %v506 = vpop.f32.mrb[0].mxu0
      %v507 = vadd.f32 0.0, %v506
      %v508 = vpop.f32.mrb[0].mxu0
      %v509 = vpop.f32.mrb[0].mxu0
      %v510 = vadd.f32 0.0, %v509
      %v511 = vpop.f32.mrb[0].mxu0
      %512 = vdwg.mxu0
      %v530 = vunpack.c.l.b16 %v369
      %v531 = vunpack.c.l.b16 %v370
      %v532 = vunpack.c.l.b16 %v371
      %v533 = vunpack.c.l.b16 %v372
      %v534 = vunpack.c.l.b16 %v373
      %v535 = vunpack.c.l.b16 %v374
      %v536 = vunpack.c.l.b16 %v375
      %v537 = vunpack.c.l.b16 %v376
      %v538 = vunpack.c.l.b16 %v377
      %v539 = vunpack.c.l.b16 %v378
      %v540 = vunpack.c.l.b16 %v379
      %v541 = vunpack.c.l.b16 %v380
      %v542 = vunpack.c.l.b16 %v381
      %v543 = vunpack.c.l.b16 %v382
      %v544 = vunpack.c.l.b16 %v383
      %v545 = vunpack.c.l.b16 %v384
      %v546 = vpack.c.b16 %v531, %v530
      %v547 = vpack.c.b16 %v533, %v532
      %v548 = vpack.c.b16 %v535, %v534
      %v549 = vpack.c.b16 %v537, %v536
      %v550 = vpack.c.b16 %v539, %v538
      %v551 = vpack.c.b16 %v541, %v540
      %v552 = vpack.c.b16 %v543, %v542
      %v553 = vpack.c.b16 %v545, %v544
      %562 = vmatprep.subr.bf16.mxu0 0
      %563 = vmatpush1.bf16.msra.mxu0 %v546
      %564 = vmatprep.subr.bf16.mxu0 0
      %565 = vmatpush1.bf16.msra.mxu0 %v547
      %566 = vmatprep.subr.bf16.mxu0 0
      %567 = vmatpush1.bf16.msra.mxu0 %v548
      %568 = vmatprep.subr.bf16.mxu0 0
      %569 = vmatpush1.bf16.msra.mxu0 %v549
      %570 = vmatprep.subr.bf16.mxu0 0
      %571 = vmatpush1.bf16.msra.mxu0 %v550
      %572 = vmatprep.subr.bf16.mxu0 0
      %573 = vmatpush1.bf16.msra.mxu0 %v551
      %574 = vmatprep.subr.bf16.mxu0 0
      %575 = vmatpush1.bf16.msra.mxu0 %v552
      %576 = vmatprep.subr.bf16.mxu0 0
      %577 = vmatpush1.bf16.msra.mxu0 %v553
      %578 = vmatprep.subr.bf16.mxu0 0
      %579 = vmatpush1.bf16.msra.mxu0 0
      %580 = vmatprep.subr.bf16.mxu0 0
      %581 = vmatpush1.bf16.msra.mxu0 0
      %582 = vmatprep.subr.bf16.mxu0 0
      %583 = vmatpush1.bf16.msra.mxu0 0
      %584 = vmatprep.subr.bf16.mxu0 0
      %585 = vmatpush1.bf16.msra.mxu0 0
      %586 = vmatprep.subr.bf16.mxu0 0
      %587 = vmatpush1.bf16.msra.mxu0 0
      %588 = vmatprep.subr.bf16.mxu0 0
      %589 = vmatpush1.bf16.msra.mxu0 0
      %590 = vmatprep.subr.bf16.mxu0 0
      %591 = vmatpush1.bf16.msra.mxu0 0
      %592 = vmatprep.subr.bf16.mxu0 0
      %593 = vmatpush1.bf16.msra.mxu0 0
      %594 = vmatprep.mubr.bf16.mxu0 0
      %595 = vmatmul.mubr.bf16.gmra.mrb[0].mxu0 %v408
      %v596 = vpop.f32.mrb[0].mxu0
      %v597 = vadd.f32 %v507, %v596
      %v598 = vpop.f32.mrb[0].mxu0
      %v599 = vpop.f32.mrb[0].mxu0
      %v600 = vadd.f32 %v510, %v599
      %v601 = vpop.f32.mrb[0].mxu0
      %602 = vdwg.mxu0
      %s603 = scalar_lea.vmem %s3, 128
      %v604 = vld [vmem:[%s603] sm:$0xf]
      %v605 = vld [vmem:[%s603 + $0x4] sm:$0xf]
      %v606 = vld [vmem:[%s603 + $0x8] sm:$0xf]
      %v607 = vld [vmem:[%s603 + $0xc] sm:$0xf]
      %v608 = vld [vmem:[%s603 + $0x10] sm:$0xf]
      %v609 = vld [vmem:[%s603 + $0x14] sm:$0xf]
      %v610 = vld [vmem:[%s603 + $0x18] sm:$0xf]
      %v611 = vld [vmem:[%s603 + $0x1c] sm:$0xf]
      %v612 = vld [vmem:[%s603 + $0x20] sm:$0xf]
      %v613 = vld [vmem:[%s603 + $0x24] sm:$0xf]
      %v614 = vld [vmem:[%s603 + $0x28] sm:$0xf]
      %v615 = vld [vmem:[%s603 + $0x2c] sm:$0xf]
      %v616 = vld [vmem:[%s603 + $0x30] sm:$0xf]
      %v617 = vld [vmem:[%s603 + $0x34] sm:$0xf]
      %v618 = vld [vmem:[%s603 + $0x38] sm:$0xf]
      %v619 = vld [vmem:[%s603 + $0x3c] sm:$0xf]
      %vm620 = vcmask 1046528
      %v621 = vrot.slane %v408, 1
      %v622 = vrot.slane %v409, 1
      %v623 = vsel %vm620, %v621, %v622
      %v641 = vunpack.c.l.b16 %v604
      %v642 = vunpack.c.l.b16 %v605
      %v643 = vunpack.c.l.b16 %v606
      %v644 = vunpack.c.l.b16 %v607
      %v645 = vunpack.c.l.b16 %v608
      %v646 = vunpack.c.l.b16 %v609
      %v647 = vunpack.c.l.b16 %v610
      %v648 = vunpack.c.l.b16 %v611
      %v649 = vunpack.c.l.b16 %v612
      %v650 = vunpack.c.l.b16 %v613
      %v651 = vunpack.c.l.b16 %v614
      %v652 = vunpack.c.l.b16 %v615
      %v653 = vunpack.c.l.b16 %v616
      %v654 = vunpack.c.l.b16 %v617
      %v655 = vunpack.c.l.b16 %v618
      %v656 = vunpack.c.l.b16 %v619
      %v657 = vpack.c.b16 %v642, %v641
      %v658 = vpack.c.b16 %v644, %v643
      %v659 = vpack.c.b16 %v646, %v645
      %v660 = vpack.c.b16 %v648, %v647
      %v661 = vpack.c.b16 %v650, %v649
      %v662 = vpack.c.b16 %v652, %v651
      %v663 = vpack.c.b16 %v654, %v653
      %v664 = vpack.c.b16 %v656, %v655
      %673 = vmatprep.subr.bf16.mxu0 0
      %674 = vmatpush1.bf16.msra.mxu0 %v657
      %675 = vmatprep.subr.bf16.mxu0 0
      %676 = vmatpush1.bf16.msra.mxu0 %v658
      %677 = vmatprep.subr.bf16.mxu0 0
      %678 = vmatpush1.bf16.msra.mxu0 %v659
      %679 = vmatprep.subr.bf16.mxu0 0
      %680 = vmatpush1.bf16.msra.mxu0 %v660
      %681 = vmatprep.subr.bf16.mxu0 0
      %682 = vmatpush1.bf16.msra.mxu0 %v661
      %683 = vmatprep.subr.bf16.mxu0 0
      %684 = vmatpush1.bf16.msra.mxu0 %v662
      %685 = vmatprep.subr.bf16.mxu0 0
      %686 = vmatpush1.bf16.msra.mxu0 %v663
      %687 = vmatprep.subr.bf16.mxu0 0
      %688 = vmatpush1.bf16.msra.mxu0 %v664
      %689 = vmatprep.subr.bf16.mxu0 0
      %690 = vmatpush1.bf16.msra.mxu0 0
      %691 = vmatprep.subr.bf16.mxu0 0
      %692 = vmatpush1.bf16.msra.mxu0 0
      %693 = vmatprep.subr.bf16.mxu0 0
      %694 = vmatpush1.bf16.msra.mxu0 0
      %695 = vmatprep.subr.bf16.mxu0 0
      %696 = vmatpush1.bf16.msra.mxu0 0
      %697 = vmatprep.subr.bf16.mxu0 0
      %698 = vmatpush1.bf16.msra.mxu0 0
      %699 = vmatprep.subr.bf16.mxu0 0
      %700 = vmatpush1.bf16.msra.mxu0 0
      %701 = vmatprep.subr.bf16.mxu0 0
      %702 = vmatpush1.bf16.msra.mxu0 0
      %703 = vmatprep.subr.bf16.mxu0 0
      %704 = vmatpush1.bf16.msra.mxu0 0
      %705 = vmatprep.mubr.bf16.mxu0 0
      %706 = vmatmul.mubr.bf16.gmra.mrb[0].mxu0 %v623
      %v707 = vpop.f32.mrb[0].mxu0
      %v708 = vadd.f32 0.0, %v707
      %v709 = vpop.f32.mrb[0].mxu0
      %v710 = vpop.f32.mrb[0].mxu0
      %v711 = vadd.f32 0.0, %v710
      %v712 = vpop.f32.mrb[0].mxu0
      %713 = vdwg.mxu0
      %v714 = vadd.f32 %v597, %v708
      %v715 = vadd.f32 %v600, %v711
      %v716 = vld [vmem:[%s343] sm:$0xf]
      %v717 = vld [vmem:[%s343 + $0x4] sm:$0xf]
      %v718 = vld [vmem:[%s343 + $0x8] sm:$0x1]
      %s719 = scalar_lea.vmem %s3, 192
      %v720 = vld [vmem:[%s719] sm:$0xf]
      %v721 = vld [vmem:[%s719 + $0x4] sm:$0xf]
      %v722 = vld [vmem:[%s719 + $0x8] sm:$0xf]
      %v723 = vld [vmem:[%s719 + $0xc] sm:$0xf]
      %v724 = vld [vmem:[%s719 + $0x10] sm:$0xf]
      %v725 = vld [vmem:[%s719 + $0x14] sm:$0xf]
      %v726 = vld [vmem:[%s719 + $0x18] sm:$0xf]
      %v727 = vld [vmem:[%s719 + $0x1c] sm:$0xf]
      %v728 = vld [vmem:[%s719 + $0x20] sm:$0xf]
      %v729 = vld [vmem:[%s719 + $0x24] sm:$0xf]
      %v730 = vld [vmem:[%s719 + $0x28] sm:$0xf]
      %v731 = vld [vmem:[%s719 + $0x2c] sm:$0xf]
      %v732 = vld [vmem:[%s719 + $0x30] sm:$0xf]
      %v733 = vld [vmem:[%s719 + $0x34] sm:$0xf]
      %v734 = vld [vmem:[%s719 + $0x38] sm:$0xf]
      %v735 = vld [vmem:[%s719 + $0x3c] sm:$0xf]
      %v738 = vunpack.c.l.b16 %v716
      %v739 = vunpack.c.l.b16 %v717
      %v740 = vpack.c.b16 %v739, %v738
      %v758 = vunpack.c.l.b16 %v720
      %v759 = vunpack.c.l.b16 %v721
      %v760 = vunpack.c.l.b16 %v722
      %v761 = vunpack.c.l.b16 %v723
      %v762 = vunpack.c.l.b16 %v724
      %v763 = vunpack.c.l.b16 %v725
      %v764 = vunpack.c.l.b16 %v726
      %v765 = vunpack.c.l.b16 %v727
      %v766 = vunpack.c.l.b16 %v728
      %v767 = vunpack.c.l.b16 %v729
      %v768 = vunpack.c.l.b16 %v730
      %v769 = vunpack.c.l.b16 %v731
      %v770 = vunpack.c.l.b16 %v732
      %v771 = vunpack.c.l.b16 %v733
      %v772 = vunpack.c.l.b16 %v734
      %v773 = vunpack.c.l.b16 %v735
      %v774 = vpack.c.b16 %v759, %v758
      %v775 = vpack.c.b16 %v761, %v760
      %v776 = vpack.c.b16 %v763, %v762
      %v777 = vpack.c.b16 %v765, %v764
      %v778 = vpack.c.b16 %v767, %v766
      %v779 = vpack.c.b16 %v769, %v768
      %v780 = vpack.c.b16 %v771, %v770
      %v781 = vpack.c.b16 %v773, %v772
      %790 = vmatprep.subr.bf16.mxu0 0
      %791 = vmatpush1.bf16.msra.mxu0 %v774
      %792 = vmatprep.subr.bf16.mxu0 0
      %793 = vmatpush1.bf16.msra.mxu0 %v775
      %794 = vmatprep.subr.bf16.mxu0 0
      %795 = vmatpush1.bf16.msra.mxu0 %v776
      %796 = vmatprep.subr.bf16.mxu0 0
      %797 = vmatpush1.bf16.msra.mxu0 %v777
      %798 = vmatprep.subr.bf16.mxu0 0
      %799 = vmatpush1.bf16.msra.mxu0 %v778
      %800 = vmatprep.subr.bf16.mxu0 0
      %801 = vmatpush1.bf16.msra.mxu0 %v779
      %802 = vmatprep.subr.bf16.mxu0 0
      %803 = vmatpush1.bf16.msra.mxu0 %v780
      %804 = vmatprep.subr.bf16.mxu0 0
      %805 = vmatpush1.bf16.msra.mxu0 %v781
      %806 = vmatprep.subr.bf16.mxu0 0
      %807 = vmatpush1.bf16.msra.mxu0 0
      %808 = vmatprep.subr.bf16.mxu0 0
      %809 = vmatpush1.bf16.msra.mxu0 0
      %810 = vmatprep.subr.bf16.mxu0 0
      %811 = vmatpush1.bf16.msra.mxu0 0
      %812 = vmatprep.subr.bf16.mxu0 0
      %813 = vmatpush1.bf16.msra.mxu0 0
      %814 = vmatprep.subr.bf16.mxu0 0
      %815 = vmatpush1.bf16.msra.mxu0 0
      %816 = vmatprep.subr.bf16.mxu0 0
      %817 = vmatpush1.bf16.msra.mxu0 0
      %818 = vmatprep.subr.bf16.mxu0 0
      %819 = vmatpush1.bf16.msra.mxu0 0
      %820 = vmatprep.subr.bf16.mxu0 0
      %821 = vmatpush1.bf16.msra.mxu0 0
      %822 = vmatprep.mubr.bf16.mxu0 0
      %823 = vmatmul.mubr.bf16.gmra.mrb[0].mxu0 %v740
      %v824 = vpop.f32.mrb[0].mxu0
      %v825 = vadd.f32 0.0, %v824
      %v826 = vpop.f32.mrb[0].mxu0
      %v827 = vpop.f32.mrb[0].mxu0
      %v828 = vadd.f32 0.0, %v827
      %v829 = vpop.f32.mrb[0].mxu0
      %830 = vdwg.mxu0
      %v831 = vadd.f32 %v714, %v825
      %v832 = vadd.f32 %v715, %v828
      %s833 = scalar_lea.vmem %s3, 256
      %v834 = vld [vmem:[%s833] sm:$0xf]
      %v835 = vld [vmem:[%s833 + $0x4] sm:$0xf]
      %v836 = vld [vmem:[%s833 + $0x8] sm:$0xf]
      %v837 = vld [vmem:[%s833 + $0xc] sm:$0xf]
      %v838 = vld [vmem:[%s833 + $0x10] sm:$0xf]
      %v839 = vld [vmem:[%s833 + $0x14] sm:$0xf]
      %v840 = vld [vmem:[%s833 + $0x18] sm:$0xf]
      %v841 = vld [vmem:[%s833 + $0x1c] sm:$0xf]
      %v842 = vld [vmem:[%s833 + $0x20] sm:$0xf]
      %v843 = vld [vmem:[%s833 + $0x24] sm:$0xf]
      %v844 = vld [vmem:[%s833 + $0x28] sm:$0xf]
      %v845 = vld [vmem:[%s833 + $0x2c] sm:$0xf]
      %v846 = vld [vmem:[%s833 + $0x30] sm:$0xf]
      %v847 = vld [vmem:[%s833 + $0x34] sm:$0xf]
      %v848 = vld [vmem:[%s833 + $0x38] sm:$0xf]
      %v849 = vld [vmem:[%s833 + $0x3c] sm:$0xf]
      %v851 = vunpack.c.l.b16 %v718
      %v852 = vpack.c.b16 %v851, %v851
      %v854 = vshrl.u32 %v740, 16
      %v856 = vshll.u32 %v740, 16
      %v858 = vrot.slane %v856, 1
      %v859 = vor.u32 %v854, %v858
      %v861 = vshll.u32 %v852, 16
      %v863 = vrot.slane %v861, 1
      %v864 = vsel %vm410, %v859, %v863
      %v882 = vunpack.c.l.b16 %v834
      %v883 = vunpack.c.l.b16 %v835
      %v884 = vunpack.c.l.b16 %v836
      %v885 = vunpack.c.l.b16 %v837
      %v886 = vunpack.c.l.b16 %v838
      %v887 = vunpack.c.l.b16 %v839
      %v888 = vunpack.c.l.b16 %v840
      %v889 = vunpack.c.l.b16 %v841
      %v890 = vunpack.c.l.b16 %v842
      %v891 = vunpack.c.l.b16 %v843
      %v892 = vunpack.c.l.b16 %v844
      %v893 = vunpack.c.l.b16 %v845
      %v894 = vunpack.c.l.b16 %v846
      %v895 = vunpack.c.l.b16 %v847
      %v896 = vunpack.c.l.b16 %v848
      %v897 = vunpack.c.l.b16 %v849
      %v898 = vpack.c.b16 %v883, %v882
      %v899 = vpack.c.b16 %v885, %v884
      %v900 = vpack.c.b16 %v887, %v886
      %v901 = vpack.c.b16 %v889, %v888
      %v902 = vpack.c.b16 %v891, %v890
      %v903 = vpack.c.b16 %v893, %v892
      %v904 = vpack.c.b16 %v895, %v894
      %v905 = vpack.c.b16 %v897, %v896
      %914 = vmatprep.subr.bf16.mxu0 0
      %915 = vmatpush1.bf16.msra.mxu0 %v898
      %916 = vmatprep.subr.bf16.mxu0 0
      %917 = vmatpush1.bf16.msra.mxu0 %v899
      %918 = vmatprep.subr.bf16.mxu0 0
      %919 = vmatpush1.bf16.msra.mxu0 %v900
      %920 = vmatprep.subr.bf16.mxu0 0
      %921 = vmatpush1.bf16.msra.mxu0 %v901
      %922 = vmatprep.subr.bf16.mxu0 0
      %923 = vmatpush1.bf16.msra.mxu0 %v902
      %924 = vmatprep.subr.bf16.mxu0 0
      %925 = vmatpush1.bf16.msra.mxu0 %v903
      %926 = vmatprep.subr.bf16.mxu0 0
      %927 = vmatpush1.bf16.msra.mxu0 %v904
      %928 = vmatprep.subr.bf16.mxu0 0
      %929 = vmatpush1.bf16.msra.mxu0 %v905
      %930 = vmatprep.subr.bf16.mxu0 0
      %931 = vmatpush1.bf16.msra.mxu0 0
      %932 = vmatprep.subr.bf16.mxu0 0
      %933 = vmatpush1.bf16.msra.mxu0 0
      %934 = vmatprep.subr.bf16.mxu0 0
      %935 = vmatpush1.bf16.msra.mxu0 0
      %936 = vmatprep.subr.bf16.mxu0 0
      %937 = vmatpush1.bf16.msra.mxu0 0
      %938 = vmatprep.subr.bf16.mxu0 0
      %939 = vmatpush1.bf16.msra.mxu0 0
      %940 = vmatprep.subr.bf16.mxu0 0
      %941 = vmatpush1.bf16.msra.mxu0 0
      %942 = vmatprep.subr.bf16.mxu0 0
      %943 = vmatpush1.bf16.msra.mxu0 0
      %944 = vmatprep.subr.bf16.mxu0 0
      %945 = vmatpush1.bf16.msra.mxu0 0
      %946 = vmatprep.mubr.bf16.mxu0 0
      %947 = vmatmul.mubr.bf16.gmra.mrb[0].mxu0 %v864
      %v948 = vpop.f32.mrb[0].mxu0
      %v949 = vadd.f32 0.0, %v948
      %v950 = vpop.f32.mrb[0].mxu0
      %v951 = vpop.f32.mrb[0].mxu0
      %v952 = vadd.f32 0.0, %v951
      %v953 = vpop.f32.mrb[0].mxu0
      %954 = vdwg.mxu0
      %v955 = vadd.f32 %v831, %v949
      %v956 = vadd.f32 %v832, %v952
      %s957 = scalar_lea.vmem %s3, 320
      %v958 = vld [vmem:[%s957] sm:$0xf]
      %v959 = vld [vmem:[%s957 + $0x4] sm:$0xf]
      %v960 = vld [vmem:[%s957 + $0x8] sm:$0xf]
      %v961 = vld [vmem:[%s957 + $0xc] sm:$0xf]
      %v962 = vld [vmem:[%s957 + $0x10] sm:$0xf]
      %v963 = vld [vmem:[%s957 + $0x14] sm:$0xf]
      %v964 = vld [vmem:[%s957 + $0x18] sm:$0xf]
      %v965 = vld [vmem:[%s957 + $0x1c] sm:$0xf]
      %v966 = vld [vmem:[%s957 + $0x20] sm:$0xf]
      %v967 = vld [vmem:[%s957 + $0x24] sm:$0xf]
      %v968 = vld [vmem:[%s957 + $0x28] sm:$0xf]
      %v969 = vld [vmem:[%s957 + $0x2c] sm:$0xf]
      %v970 = vld [vmem:[%s957 + $0x30] sm:$0xf]
      %v971 = vld [vmem:[%s957 + $0x34] sm:$0xf]
      %v972 = vld [vmem:[%s957 + $0x38] sm:$0xf]
      %v973 = vld [vmem:[%s957 + $0x3c] sm:$0xf]
      %v974 = vrot.slane %v740, 1
      %v975 = vrot.slane %v852, 1
      %v976 = vsel %vm620, %v974, %v975
      %v994 = vunpack.c.l.b16 %v958
      %v995 = vunpack.c.l.b16 %v959
      %v996 = vunpack.c.l.b16 %v960
      %v997 = vunpack.c.l.b16 %v961
      %v998 = vunpack.c.l.b16 %v962
      %v999 = vunpack.c.l.b16 %v963
      %v1000 = vunpack.c.l.b16 %v964
      %v1001 = vunpack.c.l.b16 %v965
      %v1002 = vunpack.c.l.b16 %v966
      %v1003 = vunpack.c.l.b16 %v967
      %v1004 = vunpack.c.l.b16 %v968
      %v1005 = vunpack.c.l.b16 %v969
      %v1006 = vunpack.c.l.b16 %v970
      %v1007 = vunpack.c.l.b16 %v971
      %v1008 = vunpack.c.l.b16 %v972
      %v1009 = vunpack.c.l.b16 %v973
      %v1010 = vpack.c.b16 %v995, %v994
      %v1011 = vpack.c.b16 %v997, %v996
      %v1012 = vpack.c.b16 %v999, %v998
      %v1013 = vpack.c.b16 %v1001, %v1000
      %v1014 = vpack.c.b16 %v1003, %v1002
      %v1015 = vpack.c.b16 %v1005, %v1004
      %v1016 = vpack.c.b16 %v1007, %v1006
      %v1017 = vpack.c.b16 %v1009, %v1008
      %1026 = vmatprep.subr.bf16.mxu0 0
      %1027 = vmatpush1.bf16.msra.mxu0 %v1010
      %1028 = vmatprep.subr.bf16.mxu0 0
      %1029 = vmatpush1.bf16.msra.mxu0 %v1011
      %1030 = vmatprep.subr.bf16.mxu0 0
      %1031 = vmatpush1.bf16.msra.mxu0 %v1012
      %1032 = vmatprep.subr.bf16.mxu0 0
      %1033 = vmatpush1.bf16.msra.mxu0 %v1013
      %1034 = vmatprep.subr.bf16.mxu0 0
      %1035 = vmatpush1.bf16.msra.mxu0 %v1014
      %1036 = vmatprep.subr.bf16.mxu0 0
      %1037 = vmatpush1.bf16.msra.mxu0 %v1015
      %1038 = vmatprep.subr.bf16.mxu0 0
      %1039 = vmatpush1.bf16.msra.mxu0 %v1016
      %1040 = vmatprep.subr.bf16.mxu0 0
      %1041 = vmatpush1.bf16.msra.mxu0 %v1017
      %1042 = vmatprep.subr.bf16.mxu0 0
      %1043 = vmatpush1.bf16.msra.mxu0 0
      %1044 = vmatprep.subr.bf16.mxu0 0
      %1045 = vmatpush1.bf16.msra.mxu0 0
      %1046 = vmatprep.subr.bf16.mxu0 0
      %1047 = vmatpush1.bf16.msra.mxu0 0
      %1048 = vmatprep.subr.bf16.mxu0 0
      %1049 = vmatpush1.bf16.msra.mxu0 0
      %1050 = vmatprep.subr.bf16.mxu0 0
      %1051 = vmatpush1.bf16.msra.mxu0 0
      %1052 = vmatprep.subr.bf16.mxu0 0
      %1053 = vmatpush1.bf16.msra.mxu0 0
      %1054 = vmatprep.subr.bf16.mxu0 0
      %1055 = vmatpush1.bf16.msra.mxu0 0
      %1056 = vmatprep.subr.bf16.mxu0 0
      %1057 = vmatpush1.bf16.msra.mxu0 0
      %1058 = vmatprep.mubr.bf16.mxu0 0
      %1059 = vmatmul.mubr.bf16.gmra.mrb[0].mxu0 %v976
      %v1060 = vpop.f32.mrb[0].mxu0
      %v1061 = vadd.f32 0.0, %v1060
      %v1062 = vpop.f32.mrb[0].mxu0
      %v1063 = vpop.f32.mrb[0].mxu0
      %v1064 = vadd.f32 0.0, %v1063
      %v1065 = vpop.f32.mrb[0].mxu0
      %1066 = vdwg.mxu0
      %v1067 = vadd.f32 %v955, %v1061
      %v1068 = vadd.f32 %v956, %v1064
      %v1069 = vld [vmem:[%s354] sm:$0xf]
      %v1070 = vld [vmem:[%s354 + $0x4] sm:$0xf]
      %v1071 = vld [vmem:[%s354 + $0x8] sm:$0x1]
      %s1072 = scalar_lea.vmem %s3, 384
      %v1073 = vld [vmem:[%s1072] sm:$0xf]
      %v1074 = vld [vmem:[%s1072 + $0x4] sm:$0xf]
      %v1075 = vld [vmem:[%s1072 + $0x8] sm:$0xf]
      %v1076 = vld [vmem:[%s1072 + $0xc] sm:$0xf]
      %v1077 = vld [vmem:[%s1072 + $0x10] sm:$0xf]
      %v1078 = vld [vmem:[%s1072 + $0x14] sm:$0xf]
      %v1079 = vld [vmem:[%s1072 + $0x18] sm:$0xf]
      %v1080 = vld [vmem:[%s1072 + $0x1c] sm:$0xf]
      %v1081 = vld [vmem:[%s1072 + $0x20] sm:$0xf]
      %v1082 = vld [vmem:[%s1072 + $0x24] sm:$0xf]
      %v1083 = vld [vmem:[%s1072 + $0x28] sm:$0xf]
      %v1084 = vld [vmem:[%s1072 + $0x2c] sm:$0xf]
      %v1085 = vld [vmem:[%s1072 + $0x30] sm:$0xf]
      %v1086 = vld [vmem:[%s1072 + $0x34] sm:$0xf]
      %v1087 = vld [vmem:[%s1072 + $0x38] sm:$0xf]
      %v1088 = vld [vmem:[%s1072 + $0x3c] sm:$0xf]
      %v1091 = vunpack.c.l.b16 %v1069
      %v1092 = vunpack.c.l.b16 %v1070
      %v1093 = vpack.c.b16 %v1092, %v1091
      %v1111 = vunpack.c.l.b16 %v1073
      %v1112 = vunpack.c.l.b16 %v1074
      %v1113 = vunpack.c.l.b16 %v1075
      %v1114 = vunpack.c.l.b16 %v1076
      %v1115 = vunpack.c.l.b16 %v1077
      %v1116 = vunpack.c.l.b16 %v1078
      %v1117 = vunpack.c.l.b16 %v1079
      %v1118 = vunpack.c.l.b16 %v1080
      %v1119 = vunpack.c.l.b16 %v1081
      %v1120 = vunpack.c.l.b16 %v1082
      %v1121 = vunpack.c.l.b16 %v1083
      %v1122 = vunpack.c.l.b16 %v1084
      %v1123 = vunpack.c.l.b16 %v1085
      %v1124 = vunpack.c.l.b16 %v1086
      %v1125 = vunpack.c.l.b16 %v1087
      %v1126 = vunpack.c.l.b16 %v1088
      %v1127 = vpack.c.b16 %v1112, %v1111
      %v1128 = vpack.c.b16 %v1114, %v1113
      %v1129 = vpack.c.b16 %v1116, %v1115
      %v1130 = vpack.c.b16 %v1118, %v1117
      %v1131 = vpack.c.b16 %v1120, %v1119
      %v1132 = vpack.c.b16 %v1122, %v1121
      %v1133 = vpack.c.b16 %v1124, %v1123
      %v1134 = vpack.c.b16 %v1126, %v1125
      %1143 = vmatprep.subr.bf16.mxu0 0
      %1144 = vmatpush1.bf16.msra.mxu0 %v1127
      %1145 = vmatprep.subr.bf16.mxu0 0
      %1146 = vmatpush1.bf16.msra.mxu0 %v1128
      %1147 = vmatprep.subr.bf16.mxu0 0
      %1148 = vmatpush1.bf16.msra.mxu0 %v1129
      %1149 = vmatprep.subr.bf16.mxu0 0
      %1150 = vmatpush1.bf16.msra.mxu0 %v1130
      %1151 = vmatprep.subr.bf16.mxu0 0
      %1152 = vmatpush1.bf16.msra.mxu0 %v1131
      %1153 = vmatprep.subr.bf16.mxu0 0
      %1154 = vmatpush1.bf16.msra.mxu0 %v1132
      %1155 = vmatprep.subr.bf16.mxu0 0
      %1156 = vmatpush1.bf16.msra.mxu0 %v1133
      %1157 = vmatprep.subr.bf16.mxu0 0
      %1158 = vmatpush1.bf16.msra.mxu0 %v1134
      %1159 = vmatprep.subr.bf16.mxu0 0
      %1160 = vmatpush1.bf16.msra.mxu0 0
      %1161 = vmatprep.subr.bf16.mxu0 0
      %1162 = vmatpush1.bf16.msra.mxu0 0
      %1163 = vmatprep.subr.bf16.mxu0 0
      %1164 = vmatpush1.bf16.msra.mxu0 0
      %1165 = vmatprep.subr.bf16.mxu0 0
      %1166 = vmatpush1.bf16.msra.mxu0 0
      %1167 = vmatprep.subr.bf16.mxu0 0
      %1168 = vmatpush1.bf16.msra.mxu0 0
      %1169 = vmatprep.subr.bf16.mxu0 0
      %1170 = vmatpush1.bf16.msra.mxu0 0
      %1171 = vmatprep.subr.bf16.mxu0 0
      %1172 = vmatpush1.bf16.msra.mxu0 0
      %1173 = vmatprep.subr.bf16.mxu0 0
      %1174 = vmatpush1.bf16.msra.mxu0 0
      %1175 = vmatprep.mubr.bf16.mxu0 0
      %1176 = vmatmul.mubr.bf16.gmra.mrb[0].mxu0 %v1093
      %v1177 = vpop.f32.mrb[0].mxu0
      %v1178 = vadd.f32 0.0, %v1177
      %v1179 = vpop.f32.mrb[0].mxu0
      %v1180 = vpop.f32.mrb[0].mxu0
      %v1181 = vadd.f32 0.0, %v1180
      %v1182 = vpop.f32.mrb[0].mxu0
      %1183 = vdwg.mxu0
      %v1184 = vadd.f32 %v1067, %v1178
      %v1185 = vadd.f32 %v1068, %v1181
      %s1186 = scalar_lea.vmem %s3, 448
      %v1187 = vld [vmem:[%s1186] sm:$0xf]
      %v1188 = vld [vmem:[%s1186 + $0x4] sm:$0xf]
      %v1189 = vld [vmem:[%s1186 + $0x8] sm:$0xf]
      %v1190 = vld [vmem:[%s1186 + $0xc] sm:$0xf]
      %v1191 = vld [vmem:[%s1186 + $0x10] sm:$0xf]
      %v1192 = vld [vmem:[%s1186 + $0x14] sm:$0xf]
      %v1193 = vld [vmem:[%s1186 + $0x18] sm:$0xf]
      %v1194 = vld [vmem:[%s1186 + $0x1c] sm:$0xf]
      %v1195 = vld [vmem:[%s1186 + $0x20] sm:$0xf]
      %v1196 = vld [vmem:[%s1186 + $0x24] sm:$0xf]
      %v1197 = vld [vmem:[%s1186 + $0x28] sm:$0xf]
      %v1198 = vld [vmem:[%s1186 + $0x2c] sm:$0xf]
      %v1199 = vld [vmem:[%s1186 + $0x30] sm:$0xf]
      %v1200 = vld [vmem:[%s1186 + $0x34] sm:$0xf]
      %v1201 = vld [vmem:[%s1186 + $0x38] sm:$0xf]
      %v1202 = vld [vmem:[%s1186 + $0x3c] sm:$0xf]
      %v1204 = vunpack.c.l.b16 %v1071
      %v1205 = vpack.c.b16 %v1204, %v1204
      %v1207 = vshrl.u32 %v1093, 16
      %v1209 = vshll.u32 %v1093, 16
      %v1211 = vrot.slane %v1209, 1
      %v1212 = vor.u32 %v1207, %v1211
      %v1214 = vshll.u32 %v1205, 16
      %v1216 = vrot.slane %v1214, 1
      %v1217 = vsel %vm410, %v1212, %v1216
      %v1235 = vunpack.c.l.b16 %v1187
      %v1236 = vunpack.c.l.b16 %v1188
      %v1237 = vunpack.c.l.b16 %v1189
      %v1238 = vunpack.c.l.b16 %v1190
      %v1239 = vunpack.c.l.b16 %v1191
      %v1240 = vunpack.c.l.b16 %v1192
      %v1241 = vunpack.c.l.b16 %v1193
      %v1242 = vunpack.c.l.b16 %v1194
      %v1243 = vunpack.c.l.b16 %v1195
      %v1244 = vunpack.c.l.b16 %v1196
      %v1245 = vunpack.c.l.b16 %v1197
      %v1246 = vunpack.c.l.b16 %v1198
      %v1247 = vunpack.c.l.b16 %v1199
      %v1248 = vunpack.c.l.b16 %v1200
      %v1249 = vunpack.c.l.b16 %v1201
      %v1250 = vunpack.c.l.b16 %v1202
      %v1251 = vpack.c.b16 %v1236, %v1235
      %v1252 = vpack.c.b16 %v1238, %v1237
      %v1253 = vpack.c.b16 %v1240, %v1239
      %v1254 = vpack.c.b16 %v1242, %v1241
      %v1255 = vpack.c.b16 %v1244, %v1243
      %v1256 = vpack.c.b16 %v1246, %v1245
      %v1257 = vpack.c.b16 %v1248, %v1247
      %v1258 = vpack.c.b16 %v1250, %v1249
      %1267 = vmatprep.subr.bf16.mxu0 0
      %1268 = vmatpush1.bf16.msra.mxu0 %v1251
      %1269 = vmatprep.subr.bf16.mxu0 0
      %1270 = vmatpush1.bf16.msra.mxu0 %v1252
      %1271 = vmatprep.subr.bf16.mxu0 0
      %1272 = vmatpush1.bf16.msra.mxu0 %v1253
      %1273 = vmatprep.subr.bf16.mxu0 0
      %1274 = vmatpush1.bf16.msra.mxu0 %v1254
      %1275 = vmatprep.subr.bf16.mxu0 0
      %1276 = vmatpush1.bf16.msra.mxu0 %v1255
      %1277 = vmatprep.subr.bf16.mxu0 0
      %1278 = vmatpush1.bf16.msra.mxu0 %v1256
      %1279 = vmatprep.subr.bf16.mxu0 0
      %1280 = vmatpush1.bf16.msra.mxu0 %v1257
      %1281 = vmatprep.subr.bf16.mxu0 0
      %1282 = vmatpush1.bf16.msra.mxu0 %v1258
      %1283 = vmatprep.subr.bf16.mxu0 0
      %1284 = vmatpush1.bf16.msra.mxu0 0
      %1285 = vmatprep.subr.bf16.mxu0 0
      %1286 = vmatpush1.bf16.msra.mxu0 0
      %1287 = vmatprep.subr.bf16.mxu0 0
      %1288 = vmatpush1.bf16.msra.mxu0 0
      %1289 = vmatprep.subr.bf16.mxu0 0
      %1290 = vmatpush1.bf16.msra.mxu0 0
      %1291 = vmatprep.subr.bf16.mxu0 0
      %1292 = vmatpush1.bf16.msra.mxu0 0
      %1293 = vmatprep.subr.bf16.mxu0 0
      %1294 = vmatpush1.bf16.msra.mxu0 0
      %1295 = vmatprep.subr.bf16.mxu0 0
      %1296 = vmatpush1.bf16.msra.mxu0 0
      %1297 = vmatprep.subr.bf16.mxu0 0
      %1298 = vmatpush1.bf16.msra.mxu0 0
      %1299 = vmatprep.mubr.bf16.mxu0 0
      %1300 = vmatmul.mubr.bf16.gmra.mrb[0].mxu0 %v1217
      %v1301 = vpop.f32.mrb[0].mxu0
      %v1302 = vadd.f32 0.0, %v1301
      %v1303 = vpop.f32.mrb[0].mxu0
      %v1304 = vpop.f32.mrb[0].mxu0
      %v1305 = vadd.f32 0.0, %v1304
      %v1306 = vpop.f32.mrb[0].mxu0
      %1307 = vdwg.mxu0
      %v1308 = vadd.f32 %v1184, %v1302
      %v1309 = vadd.f32 %v1185, %v1305
      %s1310 = scalar_lea.vmem %s3, 512
      %v1311 = vld [vmem:[%s1310] sm:$0xf]
      %v1312 = vld [vmem:[%s1310 + $0x4] sm:$0xf]
      %v1313 = vld [vmem:[%s1310 + $0x8] sm:$0xf]
      %v1314 = vld [vmem:[%s1310 + $0xc] sm:$0xf]
      %v1315 = vld [vmem:[%s1310 + $0x10] sm:$0xf]
      %v1316 = vld [vmem:[%s1310 + $0x14] sm:$0xf]
      %v1317 = vld [vmem:[%s1310 + $0x18] sm:$0xf]
      %v1318 = vld [vmem:[%s1310 + $0x1c] sm:$0xf]
      %v1319 = vld [vmem:[%s1310 + $0x20] sm:$0xf]
      %v1320 = vld [vmem:[%s1310 + $0x24] sm:$0xf]
      %v1321 = vld [vmem:[%s1310 + $0x28] sm:$0xf]
      %v1322 = vld [vmem:[%s1310 + $0x2c] sm:$0xf]
      %v1323 = vld [vmem:[%s1310 + $0x30] sm:$0xf]
      %v1324 = vld [vmem:[%s1310 + $0x34] sm:$0xf]
      %v1325 = vld [vmem:[%s1310 + $0x38] sm:$0xf]
      %v1326 = vld [vmem:[%s1310 + $0x3c] sm:$0xf]
      %v1327 = vrot.slane %v1093, 1
      %v1328 = vrot.slane %v1205, 1
      %v1329 = vsel %vm620, %v1327, %v1328
      %v1347 = vunpack.c.l.b16 %v1311
      %v1348 = vunpack.c.l.b16 %v1312
      %v1349 = vunpack.c.l.b16 %v1313
      %v1350 = vunpack.c.l.b16 %v1314
      %v1351 = vunpack.c.l.b16 %v1315
      %v1352 = vunpack.c.l.b16 %v1316
      %v1353 = vunpack.c.l.b16 %v1317
      %v1354 = vunpack.c.l.b16 %v1318
      %v1355 = vunpack.c.l.b16 %v1319
      %v1356 = vunpack.c.l.b16 %v1320
      %v1357 = vunpack.c.l.b16 %v1321
      %v1358 = vunpack.c.l.b16 %v1322
      %v1359 = vunpack.c.l.b16 %v1323
      %v1360 = vunpack.c.l.b16 %v1324
      %v1361 = vunpack.c.l.b16 %v1325
      %v1362 = vunpack.c.l.b16 %v1326
      %v1363 = vpack.c.b16 %v1348, %v1347
      %v1364 = vpack.c.b16 %v1350, %v1349
      %v1365 = vpack.c.b16 %v1352, %v1351
      %v1366 = vpack.c.b16 %v1354, %v1353
      %v1367 = vpack.c.b16 %v1356, %v1355
      %v1368 = vpack.c.b16 %v1358, %v1357
      %v1369 = vpack.c.b16 %v1360, %v1359
      %v1370 = vpack.c.b16 %v1362, %v1361
      %1379 = vmatprep.subr.bf16.mxu0 0
      %1380 = vmatpush1.bf16.msra.mxu0 %v1363
      %1381 = vmatprep.subr.bf16.mxu0 0
      %1382 = vmatpush1.bf16.msra.mxu0 %v1364
      %1383 = vmatprep.subr.bf16.mxu0 0
      %1384 = vmatpush1.bf16.msra.mxu0 %v1365
      %1385 = vmatprep.subr.bf16.mxu0 0
      %1386 = vmatpush1.bf16.msra.mxu0 %v1366
      %1387 = vmatprep.subr.bf16.mxu0 0
      %1388 = vmatpush1.bf16.msra.mxu0 %v1367
      %1389 = vmatprep.subr.bf16.mxu0 0
      %1390 = vmatpush1.bf16.msra.mxu0 %v1368
      %1391 = vmatprep.subr.bf16.mxu0 0
      %1392 = vmatpush1.bf16.msra.mxu0 %v1369
      %1393 = vmatprep.subr.bf16.mxu0 0
      %1394 = vmatpush1.bf16.msra.mxu0 %v1370
      %1395 = vmatprep.subr.bf16.mxu0 0
      %1396 = vmatpush1.bf16.msra.mxu0 0
      %1397 = vmatprep.subr.bf16.mxu0 0
      %1398 = vmatpush1.bf16.msra.mxu0 0
      %1399 = vmatprep.subr.bf16.mxu0 0
      %1400 = vmatpush1.bf16.msra.mxu0 0
      %1401 = vmatprep.subr.bf16.mxu0 0
      %1402 = vmatpush1.bf16.msra.mxu0 0
      %1403 = vmatprep.subr.bf16.mxu0 0
      %1404 = vmatpush1.bf16.msra.mxu0 0
      %1405 = vmatprep.subr.bf16.mxu0 0
      %1406 = vmatpush1.bf16.msra.mxu0 0
      %1407 = vmatprep.subr.bf16.mxu0 0
      %1408 = vmatpush1.bf16.msra.mxu0 0
      %1409 = vmatprep.subr.bf16.mxu0 0
      %1410 = vmatpush1.bf16.msra.mxu0 0
      %1411 = vmatprep.mubr.bf16.mxu0 0
      %1412 = vmatmul.mubr.bf16.gmra.mrb[0].mxu0 %v1329
      %v1413 = vpop.f32.mrb[0].mxu0
      %v1414 = vadd.f32 0.0, %v1413
      %v1415 = vpop.f32.mrb[0].mxu0
      %v1416 = vpop.f32.mrb[0].mxu0
      %v1417 = vadd.f32 0.0, %v1416
      %v1418 = vpop.f32.mrb[0].mxu0
      %1419 = vdwg.mxu0
      %v1420 = vadd.f32 %v1308, %v1414
      %v1421 = vadd.f32 %v1309, %v1417
      %1422 = vst [vmem:[%s364] sm:$0xff] %v1420
      %1423 = vst [vmem:[%s364 + $0x8] sm:$0xff] %v1421
      %v1424 = vadd.f32 %v1420, %v1421
      %v1425 = vrot.slane %v1424, 4
      %v1426 = vadd.f32 %v1424, %v1425
      %v1427 = vrot.slane %v1426, 2
      %v1428 = vadd.f32 %v1426, %v1427
      %v1429 = vrot.slane %v1428, 1
      %v1430 = vadd.f32 %v1428, %v1429
      %v1431 = vmul.f32 %v1420, %v1420
      %v1432 = vmul.f32 %v1421, %v1421
      %v1433 = vadd.f32 %v1431, %v1432
      %v1434 = vrot.slane %v1433, 4
      %v1435 = vadd.f32 %v1433, %v1434
      %v1436 = vrot.slane %v1435, 2
      %v1437 = vadd.f32 %v1435, %v1436
      %v1438 = vrot.slane %v1437, 1
      %v1439 = vadd.f32 %v1437, %v1438
      %p1440 = scmp.eq.s32.totalorder %s22, 0
      %p1441 = scmp.eq.s32.totalorder %s23, 0
      %p1442 = pnand %p1440, %p1441
      %p1443 = pneg %p1442
      // Predicated region
      $region37: #{dual_conv_bn_relu_forward.4} parent=35 // pred_check
        _
      $region38: #{dual_conv_bn_relu_forward.4} parent=35 // pred_check_branch
        %1445 = sbr.rel (%p1442) target = $region40
      $region39: #{dual_conv_bn_relu_forward.4} parent=35 // pred_region
        %1446 = vst [vmem:[%s5] sm:$0x1] %v1430
        %1447 = vst [vmem:[%s6] sm:$0x1] %v1439
      $region40: #{dual_conv_bn_relu_forward.4} parent=35 // pred_fallthru
        _
      %p1448 = pneg %p1443
      // Predicated region
      $region41: #{dual_conv_bn_relu_forward.4} parent=35 // pred_check
        _
      $region42: #{dual_conv_bn_relu_forward.4} parent=35 // pred_check_branch
        %1450 = sbr.rel (%p1443) target = $region44
      $region43: #{dual_conv_bn_relu_forward.4} parent=35 // pred_region
        %v1451 = vld [vmem:[%s5] sm:$0x1]
        %v1452 = vadd.f32 %v1451, %v1430
        %1453 = vst [vmem:[%s5] sm:$0x1] %v1452
        %v1454 = vld [vmem:[%s6] sm:$0x1]
        %v1455 = vadd.f32 %v1454, %v1439
        %1456 = vst [vmem:[%s6] sm:$0x1] %v1455
      $region44: #{dual_conv_bn_relu_forward.4} parent=35 // pred_fallthru
        _
      %p1457 = scmp.lt.s32.totalorder %s22, 1
      %s1458 = scalar_select %p1457, %s22, 1
      %p1459 = scmp.lt.s32.totalorder %s23, 15
      %s1460 = scalar_select %p1459, %s23, 15
      %s1461 = smul.addr %s1460, 2
      %s1462 = smul.addr %s1458, 32
      %s1463 = sadd.s32 %s1461, %s1462
      %s1464 = smul.addr %s1463, 8
      %s1465 = scalar_lea.vmem %s4, %s1464
      // Predicated region
      $region45: #{dual_conv_bn_relu_forward.4} parent=35 // pred_check
        %p1466 = pneg %p159
      $region46: #{dual_conv_bn_relu_forward.4} parent=35 // pred_check_branch
        %1468 = sbr.rel (%p1466) target = $region48
      $region47: #{dual_conv_bn_relu_forward.4} parent=35 // pred_region
        _
      $region48: #{dual_conv_bn_relu_forward.4} parent=35 // pred_fallthru
        _
      // Predicated region
      $region49: #{dual_conv_bn_relu_forward.4} parent=35 // pred_check
        %p1469 = pneg %p180
      $region50: #{dual_conv_bn_relu_forward.4} parent=35 // pred_check_branch
        %1471 = sbr.rel (%p1469) target = $region52
      $region51: #{dual_conv_bn_relu_forward.4} parent=35 // pred_region
        _
      $region52: #{dual_conv_bn_relu_forward.4} parent=35 // pred_fallthru
        _
      // Predicated region
      $region53: #{dual_conv_bn_relu_forward.4} parent=35 // pred_check
        %p1472 = pneg %p201
      $region54: #{dual_conv_bn_relu_forward.4} parent=35 // pred_check_branch
        %1474 = sbr.rel (%p1472) target = $region56
      $region55: #{dual_conv_bn_relu_forward.4} parent=35 // pred_region
        _
      $region56: #{dual_conv_bn_relu_forward.4} parent=35 // pred_fallthru
        _
      // Predicated region
      $region57: #{dual_conv_bn_relu_forward.4} parent=35 // pred_check
        %p1475 = pneg %p180
      $region58: #{dual_conv_bn_relu_forward.4} parent=35 // pred_check_branch
        %1477 = sbr.rel (%p1475) target = $region60
      $region59: #{dual_conv_bn_relu_forward.4} parent=35 // pred_region
        _
      $region60: #{dual_conv_bn_relu_forward.4} parent=35 // pred_fallthru
        _
      // Predicated region
      $region61: #{dual_conv_bn_relu_forward.4} parent=35 // pred_check
        %p1478 = pneg %p201
      $region62: #{dual_conv_bn_relu_forward.4} parent=35 // pred_check_branch
        %1480 = sbr.rel (%p1478) target = $region64
      $region63: #{dual_conv_bn_relu_forward.4} parent=35 // pred_region
        _
      $region64: #{dual_conv_bn_relu_forward.4} parent=35 // pred_fallthru
        _
    $region36: #{dual_conv_bn_relu_forward.4} parent=5 // pred_fallthru
      _
    %p1481 = scmp.le.s32.totalorder 2, %s13
    // Predicated region
    $region65: #{dual_conv_bn_relu_forward.4} parent=5 // pred_check
      %p1482 = pneg %p1481
    $region66: #{dual_conv_bn_relu_forward.4} parent=5 // pred_check_branch
      %1484 = sbr.rel (%p1482) target = $region68
    $region67: #{dual_conv_bn_relu_forward.4} parent=5 // pred_region
      %s1485 = ssub.s32 %s13, 2
      // Predicated region
      $region69: #{dual_conv_bn_relu_forward.4} parent=67 // pred_check
        %p1486 = pneg %p165
      $region70: #{dual_conv_bn_relu_forward.4} parent=67 // pred_check_branch
        %1488 = sbr.rel (%p1486) target = $region72
      $region71: #{dual_conv_bn_relu_forward.4} parent=67 // pred_region
        %p1489 = scmp.lt.s32.totalorder %s24, 1
        %s1490 = scalar_select %p1489, %s24, 1
        %p1491 = scmp.lt.s32.totalorder %s25, 15
        %s1492 = scalar_select %p1491, %s25, 15
        %s1493 = smul.addr %s1492, 2
        %s1494 = smul.addr %s1490, 32
        %s1495 = sadd.s32 %s1493, %s1494
        %s1496 = smul.addr %s1495, 8
        %s1497 = scalar_lea.vmem %s4, %s1496
      $region72: #{dual_conv_bn_relu_forward.4} parent=67 // pred_fallthru
        _
    $region68: #{dual_conv_bn_relu_forward.4} parent=5 // pred_fallthru
      _
  $region6: #{dual_conv_bn_relu_forward.4} parent=0 // loop_footer
    %s17 = sadd.s32 1, %s13
  $region7: #{dual_conv_bn_relu_forward.4} parent=0 // loop_footer_branch
    %12 = sbr.rel target = $region3
  $region8: #{dual_conv_bn_relu_forward.4} parent=0 // loop_exit
    _

</llo_original>
